<compile_context>
chip_gen: v7x
topology: tpu7x:2x2x1
jax: 0.10.0
libtpu: 0.0.40
codegen_flags: <defaults>
</compile_context>

<pallas_src>
import functools

import jax
import jax.numpy as jnp
from jax.experimental import pallas as pl
from jax.experimental.pallas import tpu as pltpu

_HID = 128  # packed lane width: policy + value branches live side by side in the lanes


# --------------------------------------------------------------------------------------
# Parameter construction / packing
# --------------------------------------------------------------------------------------
def _layer_dims(msg_features, out_features):
    # Per-branch Linear layers (in_features, out_features), in forward order:
    #   encoder: 6->16->32->32->msg ; gnn: (1+msg)->64->64->64 ; post: 64->64->64->out
    return [(6, 16), (16, 32), (32, 32), (32, msg_features),
            (1 + msg_features, 64), (64, 64), (64, 64),
            (64, 64), (64, 64), (64, 64), (64, out_features)]


def init_branch_layers(key, msg_features, out_features):
    """torch.nn.Linear-style init: W, b ~ U(-1/sqrt(fan_in), 1/sqrt(fan_in))."""
    dims = _layer_dims(msg_features, out_features)
    keys = jax.random.split(key, len(dims))
    layers = []
    for k, (fi, fo) in zip(keys, dims):
        kw, kb = jax.random.split(k)
        bound = 1.0 / float(fi) ** 0.5
        w = jax.random.uniform(kw, (fi, fo), jnp.float32, -bound, bound)
        b = jax.random.uniform(kb, (fo,), jnp.float32, -bound, bound)
        layers.append((w, b))
    return layers


def pack_branch_pair(pol_layers, val_layers, msg_features):
    """Pack policy + value GNNBranch weights into lane-parallel block-diagonal matrices
    so a single matmul chain evaluates both branches at once (exact packing, f32)."""
    f32 = jnp.float32
    n_layers = len(pol_layers)
    wid_p = [w.shape[1] for w, _ in pol_layers]   # per-layer output width (policy)
    wid_v = [w.shape[1] for w, _ in val_layers]   # per-layer output width (value)
    off_p = [0] * n_layers                        # policy block column offset
    off_v = list(wid_p)                           # value block starts right after policy
    assert all(off_v[l] + wid_v[l] <= _HID for l in range(n_layers))

    w0 = jnp.zeros((pol_layers[0][0].shape[0], _HID), f32)        # (6, 128)
    w_stack = jnp.zeros((n_layers - 1, _HID, _HID), f32)          # layers 1..10
    g1t = jnp.zeros((1, _HID), f32)                               # time row of gnn layer 4
    b_stack = jnp.zeros((n_layers, _HID), f32)

    # layer 0: both branches read the same raw input columns
    w0 = w0.at[:, off_p[0]:off_p[0] + wid_p[0]].set(pol_layers[0][0])
    w0 = w0.at[:, off_v[0]:off_v[0] + wid_v[0]].set(val_layers[0][0])
    b_stack = b_stack.at[0, off_p[0]:off_p[0] + wid_p[0]].set(pol_layers[0][1])
    b_stack = b_stack.at[0, off_v[0]:off_v[0] + wid_v[0]].set(val_layers[0][1])

    for l in range(1, n_layers):
        (pw, pb), (vw, vb) = pol_layers[l], val_layers[l]
        rp, rv = off_p[l - 1], off_v[l - 1]     # input col offsets = previous layer outputs
        cp, cv = off_p[l], off_v[l]
        if l == 4:
            # First gnn layer: torch input is cat([enc, time]); rows 0:msg act on enc,
            # the last row acts on time and is applied separately as t * g1t per node.
            w_stack = w_stack.at[l - 1, rp:rp + msg_features, cp:cp + wid_p[l]].set(pw[:msg_features])
            w_stack = w_stack.at[l - 1, rv:rv + msg_features, cv:cv + wid_v[l]].set(vw[:msg_features])
            g1t = g1t.at[0, cp:cp + wid_p[l]].set(pw[msg_features])
            g1t = g1t.at[0, cv:cv + wid_v[l]].set(vw[msg_features])
        else:
            w_stack = w_stack.at[l - 1, rp:rp + pw.shape[0], cp:cp + wid_p[l]].set(pw)
            w_stack = w_stack.at[l - 1, rv:rv + vw.shape[0], cv:cv + wid_v[l]].set(vw)
        b_stack = b_stack.at[l, cp:cp + wid_p[l]].set(pb)
        b_stack = b_stack.at[l, cv:cv + wid_v[l]].set(vb)

    return w0, w_stack, g1t, b_stack


# --------------------------------------------------------------------------------------
# Fused kernel: both branches, encoder + message passing + post MLP, one batch tile/step
# --------------------------------------------------------------------------------------
def _fused_gnn_kernel(inp_ref, w0_ref, ws_ref, g1t_ref, b_ref, out_ref,
                      *, n_agents, b_tile, r2):
    f32 = jnp.float32
    cdt = ws_ref.dtype                     # matmul operand dtype (bf16 by default)
    N = n_agents
    rows = b_tile * N

    inp = inp_ref[...]                     # (b_tile, N, 9) = [x(6) | time(1) | pos(2)]
    x = inp[:, :, 0:6].reshape(rows, 6)
    t = inp[:, :, 6:7].reshape(rows, 1)
    pxy = inp[:, :, 7:9]                   # (b_tile, N, 2)

    def dense(h, l, relu=True):
        y = jnp.dot(h.astype(cdt), ws_ref[l - 1],
                    preferred_element_type=f32) + b_ref[l:l + 1, :]
        return jnp.maximum(y, 0.0) if relu else y

    # ---- shared encoder (policy & value packed along lanes) ----
    h = jnp.maximum(jnp.dot(x.astype(cdt), w0_ref[...], preferred_element_type=f32)
                    + b_ref[0:1, :], 0.0)
    h = dense(h, 1)
    h = dense(h, 2)
    enc = dense(h, 3, relu=False)          # (rows, 128): [0:msg]=policy enc, [msg:2msg]=value enc

    # ---- gnn layer 4 hoisted to per-node work (matmul + time term distribute over j-i) ----
    pre = jnp.dot(enc.astype(cdt), ws_ref[3], preferred_element_type=f32) + t * g1t_ref[...]
    pre_b = pre.reshape(b_tile, N, _HID)

    # ---- pairwise stage, block-diagonal per batch entry: [b,i,j] = pre_j - pre_i ----
    m = jnp.maximum(pre_b[:, None, :, :] - pre_b[:, :, None, :] + b_ref[4:5, :], 0.0)
    m5 = jnp.maximum(
        jnp.dot(m.reshape(b_tile * N * N, _HID).astype(cdt), ws_ref[4],
                preferred_element_type=f32) + b_ref[5:6, :], 0.0)
    m5 = m5.reshape(b_tile, N, N, _HID)

    # adjacency: within comm radius (pairs are already same-batch; loop=True -> i==i included)
    d = pxy[:, None, :, :] - pxy[:, :, None, :]            # (b_tile, N, N, 2)
    dist2 = jnp.sum(d * d, axis=-1)                        # (b_tile, N, N)
    adj = dist2 <= r2
    # TODO(synk): radius_graph's default max_num_neighbors=32 truncation is not modeled
    # (no effect while n_agents <= 32).

    agg_pre = jnp.sum(jnp.where(adj[:, :, :, None], m5, 0.0), axis=2).reshape(rows, _HID)
    deg = jnp.sum(adj.astype(f32), axis=2).reshape(rows, 1)

    # ---- gnn layer 6 (linear) hoisted past the 'add' aggregation (exact) ----
    agg = (jnp.dot(agg_pre.astype(cdt), ws_ref[5], preferred_element_type=f32)
           + deg * b_ref[6:7, :])

    # ---- post MLP ----
    h = dense(agg, 7)
    h = dense(h, 8)
    h = dense(h, 9)
    y = dense(h, 10, relu=False)           # (rows, 128): [:out_p]=policy, [out_p]=value, rest 0
    out_ref[...] = y.reshape(out_ref.shape)


def _pick_batch_tile(batch, n_agents, max_rows=256, max_pair_rows=4096):
    """Largest divisor batch tile targeting rows ~128-256 per grid step, with a bounded
    block-diagonal pairwise working set (v7x has only 64 MiB VMEM) and >=2 grid steps
    when possible so both v7x TensorCores get work (free on v5e/v6e)."""
    best = 1   # fallback: a single batch entry per step (may exceed caps if N is huge)
    for d in range(1, batch + 1):
        if batch % d:
            continue
        if d * n_agents > max_rows or d * n_agents * n_agents > max_pair_rows:
            continue
        if batch > 1 and batch // d < 2:
            continue
        best = d
    return best


def _vmem_limit_bytes(batch_tile, n_agents, w_bytes):
    """Generous scoped-VMEM estimate (pairwise temps dominate); capped below v7x physical."""
    rows = batch_tile * n_agents
    pair = batch_tile * n_agents * n_agents * _HID * 4   # one f32 pairwise slab
    node = rows * _HID * 4                               # one f32 node slab
    io = batch_tile * n_agents * (9 + _HID) * 4
    est = 6 * pair + 16 * node + 2 * io + 2 * w_bytes + (8 << 20)
    return int(min(max(est, 32 << 20), 60 << 20))


def fused_gnn_forward(pos, x, time, packed, comm_range, *, batch_tile=None,
                      matmul_dtype=jnp.bfloat16):
    """pos (B,N,2), x (B,N,6), time (B,N,1) -> (B,N,128) packed policy/value outputs."""
    w0, w_stack, g1t, b_stack = packed
    B, N, _ = x.shape
    if batch_tile is None:
        batch_tile = _pick_batch_tile(B, N)
    assert B % batch_tile == 0
    grid = B // batch_tile

    # Single lane-packed data operand: [x(6) | time(1) | pos(2)].
    inp = jnp.concatenate([x, time, pos], axis=-1)        # (B, N, 9)

    # bf16 matmul operands, f32 accumulation (MXU-native on v5e/v6e/v7x).
    # TODO(synk): set matmul_dtype=jnp.float32 to recover bit-level fp32-reference parity.
    w0c = w0.astype(matmul_dtype)
    wsc = w_stack.astype(matmul_dtype)

    kernel = functools.partial(_fused_gnn_kernel, n_agents=N, b_tile=batch_tile,
                               r2=float(comm_range) ** 2)

    w_bytes = int(w0c.size * w0c.dtype.itemsize + wsc.size * wsc.dtype.itemsize
                  + g1t.size * 4 + b_stack.size * 4)

    return pl.pallas_call(
        kernel,
        out_shape=jax.ShapeDtypeStruct((B, N, _HID), jnp.float32),
        grid_spec=pltpu.PrefetchScalarGridSpec(
            num_scalar_prefetch=0,
            grid=(grid,),
            in_specs=[pl.BlockSpec((batch_tile, N, 9), lambda b: (b, 0, 0)),
                      pl.BlockSpec(w0c.shape, lambda b: (0, 0)),
                      pl.BlockSpec(wsc.shape, lambda b: (0, 0, 0)),
                      pl.BlockSpec(g1t.shape, lambda b: (0, 0)),
                      pl.BlockSpec(b_stack.shape, lambda b: (0, 0))],
            out_specs=pl.BlockSpec((batch_tile, N, _HID), lambda b: (b, 0, 0)),
        ),
        compiler_params=pltpu.CompilerParams(
            dimension_semantics=("parallel",),
            vmem_limit_bytes=_vmem_limit_bytes(batch_tile, N, w_bytes)),
    )(inp, w0c, wsc, g1t, b_stack)


# --------------------------------------------------------------------------------------
# Model forward (delay sampling / gather / concat in plain JAX, GNN branches in Pallas)
# --------------------------------------------------------------------------------------
def model_forward(obs_time, packed_params, key, comm_range, comm_delay_mean,
                  comm_delay_std, lookback_frames, n_agents, outputs_per_agent):
    pos_t, vel_t = obs_time['pos'], obs_time['vel']
    goal_t, time_t = obs_time['goal'], obs_time['time']
    B = pos_t.shape[0]

    # indexes ~ Normal(mean, std), clamped to [0, lookback], floored (torch .long()).
    idx = comm_delay_mean + comm_delay_std * jax.random.normal(key, (B, 1, n_agents, 1))
    idx = jnp.clip(idx, 0.0, float(lookback_frames)).astype(jnp.int32)

    def delayed(a):
        C = a.shape[-1]
        ind = jnp.broadcast_to(idx, (B, 1, n_agents, C))
        return jnp.take_along_axis(a, ind, axis=1)[:, 0]

    pos, vel = delayed(pos_t), delayed(vel_t)          # (B, N, 2)
    goal, time = delayed(goal_t), delayed(time_t)      # (B, N, 2), (B, N, 1)

    x = jnp.concatenate([goal - pos, pos, pos + vel], axis=2)          # (B, N, 6)

    out = fused_gnn_forward(pos, x, time, packed_params, comm_range)   # (B, N, 128)
    outputs = out[:, :, :outputs_per_agent].reshape(B, n_agents * outputs_per_agent)
    values = out[:, :, outputs_per_agent]                              # (B, N)
    return outputs, values


if __name__ == "__main__":
    # Small config consistent with the module.
    batch_size, n_agents = 2, 8
    msg_features, outputs_per_agent = 32, 2
    comm_range = 1.5
    comm_delay_mean, comm_delay_std = 1.0, 1.0
    lookback_frames = int(comm_delay_mean + comm_delay_std * 3)     # 4
    n_frames = lookback_frames + 1                                  # shift '-4:0' -> 5 frames

    key = jax.random.PRNGKey(0)
    k_obs, k_idx, k_pol, k_val = jax.random.split(key, 4)
    kp, kv, kg, kt = jax.random.split(k_obs, 4)
    obs_time = {
        'pos':  jax.random.normal(kp, (batch_size, n_frames, n_agents, 2), jnp.float32),
        'vel':  jax.random.normal(kv, (batch_size, n_frames, n_agents, 2), jnp.float32) * 0.1,
        'goal': jax.random.normal(kg, (batch_size, n_frames, n_agents, 2), jnp.float32),
        'time': jax.random.uniform(kt, (batch_size, n_frames, n_agents, 1), jnp.float32),
    }

    pol_layers = init_branch_layers(k_pol, msg_features, outputs_per_agent)
    val_layers = init_branch_layers(k_val, msg_features, 1)
    packed = pack_branch_pair(pol_layers, val_layers, msg_features)

    outputs, values = model_forward(obs_time, packed, k_idx, comm_range,
                                    comm_delay_mean, comm_delay_std, lookback_frames,
                                    n_agents, outputs_per_agent)
    outputs, values = jax.block_until_ready((outputs, values))

    assert outputs.shape == (batch_size, n_agents * outputs_per_agent)
    assert values.shape == (batch_size, n_agents)
    assert jnp.all(jnp.isfinite(outputs)) and jnp.all(jnp.isfinite(values))
    print("KERNEL_OK")
</pallas_src>

<mosaic_0001>
module attributes {stable_mosaic.version = 11 : i64} {
  func.func @_fused_gnn_kernel(%arg0: i32, %arg1: memref<1x8x9xf32, #tpu.memory_space<vmem>>, %arg2: memref<6x128xbf16, #tpu.memory_space<vmem>>, %arg3: memref<10x128x128xbf16, #tpu.memory_space<vmem>>, %arg4: memref<1x128xf32, #tpu.memory_space<vmem>>, %arg5: memref<11x128xf32, #tpu.memory_space<vmem>>, %arg6: memref<1x8x128xf32, #tpu.memory_space<vmem>>) attributes {dimension_semantics = [#tpu.dimension_semantics<parallel>], iteration_bounds = array<i64: 2>, scalar_prefetch = 0 : i64, scratch_operands = 0 : i64, tpu.core_type = #tpu.core_type<tc>, window_params = [{transform_indices = @transform_0, window_bounds = array<i64: 1, 8, 9>}, {pipeline_mode = #tpu.pipeline_mode<synchronous>, transform_indices = @transform_1, window_bounds = array<i64: 6, 128>}, {pipeline_mode = #tpu.pipeline_mode<synchronous>, transform_indices = @transform_2, window_bounds = array<i64: 10, 128, 128>}, {pipeline_mode = #tpu.pipeline_mode<synchronous>, transform_indices = @transform_3, window_bounds = array<i64: 1, 128>}, {pipeline_mode = #tpu.pipeline_mode<synchronous>, transform_indices = @transform_4, window_bounds = array<i64: 11, 128>}, {transform_indices = @transform_5, window_bounds = array<i64: 1, 8, 128>}]} {
    %c0 = arith.constant 0 : index
    %c0_0 = arith.constant 0 : index
    %c0_1 = arith.constant 0 : index
    %0 = vector.load %arg1[%c0, %c0_0, %c0_1] : memref<1x8x9xf32, #tpu.memory_space<vmem>>, vector<1x8x9xf32>
    %1 = vector.extract_strided_slice %0 {offsets = [0, 0, 0], sizes = [1, 8, 6], strides = [1, 1, 1]} : vector<1x8x9xf32> to vector<1x8x6xf32>
    %2 = vector.shape_cast %1 : vector<1x8x6xf32> to vector<8x6xf32>
    %3 = vector.extract_strided_slice %0 {offsets = [0, 0, 6], sizes = [1, 8, 1], strides = [1, 1, 1]} : vector<1x8x9xf32> to vector<1x8x1xf32>
    %4 = vector.shape_cast %3 : vector<1x8x1xf32> to vector<8x1xf32>
    %5 = vector.extract_strided_slice %0 {offsets = [0, 0, 7], sizes = [1, 8, 2], strides = [1, 1, 1]} : vector<1x8x9xf32> to vector<1x8x2xf32>
    %6 = arith.truncf %2 : vector<8x6xf32> to vector<8x6xbf16>
    %c0_2 = arith.constant 0 : index
    %c0_3 = arith.constant 0 : index
    %7 = vector.load %arg2[%c0_2, %c0_3] : memref<6x128xbf16, #tpu.memory_space<vmem>>, vector<6x128xbf16>
    %cst = arith.constant dense<0.000000e+00> : vector<8x128xf32>
    %8 = tpu.matmul %6, %7, %cst {dimension_numbers = #tpu.dot_dimension_numbers<[1], [0], [0], [1], [0, 0, 1, 1], [], []>} : vector<8x6xbf16>, vector<6x128xbf16>, vector<8x128xf32> -> vector<8x128xf32>
    %c0_4 = arith.constant 0 : index
    %c0_5 = arith.constant 0 : index
    %9 = vector.load %arg5[%c0_4, %c0_5] : memref<11x128xf32, #tpu.memory_space<vmem>>, vector<1x128xf32>
    %10 = vector.broadcast %9 : vector<1x128xf32> to vector<8x128xf32>
    %11 = arith.addf %8, %10 : vector<8x128xf32>
    %cst_6 = arith.constant 0.000000e+00 : f32
    %12 = vector.broadcast %cst_6 : f32 to vector<8x128xf32>
    %13 = arith.maximumf %11, %12 : vector<8x128xf32>
    %14 = arith.truncf %13 : vector<8x128xf32> to vector<8x128xbf16>
    %c0_7 = arith.constant 0 : index
    %c0_8 = arith.constant 0 : index
    %c0_9 = arith.constant 0 : index
    %15 = vector.load %arg3[%c0_7, %c0_8, %c0_9] : memref<10x128x128xbf16, #tpu.memory_space<vmem>>, vector<1x128x128xbf16>
    %16 = vector.shape_cast %15 : vector<1x128x128xbf16> to vector<128x128xbf16>
    %cst_10 = arith.constant dense<0.000000e+00> : vector<8x128xf32>
    %17 = tpu.matmul %14, %16, %cst_10 {dimension_numbers = #tpu.dot_dimension_numbers<[1], [0], [0], [1], [0, 0, 1, 1], [], []>} : vector<8x128xbf16>, vector<128x128xbf16>, vector<8x128xf32> -> vector<8x128xf32>
    %c1 = arith.constant 1 : index
    %c0_11 = arith.constant 0 : index
    %18 = vector.load %arg5[%c1, %c0_11] : memref<11x128xf32, #tpu.memory_space<vmem>>, vector<1x128xf32>
    %19 = vector.broadcast %18 : vector<1x128xf32> to vector<8x128xf32>
    %20 = arith.addf %17, %19 : vector<8x128xf32>
    %cst_12 = arith.constant 0.000000e+00 : f32
    %21 = vector.broadcast %cst_12 : f32 to vector<8x128xf32>
    %22 = arith.maximumf %20, %21 : vector<8x128xf32>
    %23 = arith.truncf %22 : vector<8x128xf32> to vector<8x128xbf16>
    %c1_13 = arith.constant 1 : index
    %c0_14 = arith.constant 0 : index
    %c0_15 = arith.constant 0 : index
    %24 = vector.load %arg3[%c1_13, %c0_14, %c0_15] : memref<10x128x128xbf16, #tpu.memory_space<vmem>>, vector<1x128x128xbf16>
    %25 = vector.shape_cast %24 : vector<1x128x128xbf16> to vector<128x128xbf16>
    %cst_16 = arith.constant dense<0.000000e+00> : vector<8x128xf32>
    %26 = tpu.matmul %23, %25, %cst_16 {dimension_numbers = #tpu.dot_dimension_numbers<[1], [0], [0], [1], [0, 0, 1, 1], [], []>} : vector<8x128xbf16>, vector<128x128xbf16>, vector<8x128xf32> -> vector<8x128xf32>
    %c2 = arith.constant 2 : index
    %c0_17 = arith.constant 0 : index
    %27 = vector.load %arg5[%c2, %c0_17] : memref<11x128xf32, #tpu.memory_space<vmem>>, vector<1x128xf32>
    %28 = vector.broadcast %27 : vector<1x128xf32> to vector<8x128xf32>
    %29 = arith.addf %26, %28 : vector<8x128xf32>
    %cst_18 = arith.constant 0.000000e+00 : f32
    %30 = vector.broadcast %cst_18 : f32 to vector<8x128xf32>
    %31 = arith.maximumf %29, %30 : vector<8x128xf32>
    %32 = arith.truncf %31 : vector<8x128xf32> to vector<8x128xbf16>
    %c2_19 = arith.constant 2 : index
    %c0_20 = arith.constant 0 : index
    %c0_21 = arith.constant 0 : index
    %33 = vector.load %arg3[%c2_19, %c0_20, %c0_21] : memref<10x128x128xbf16, #tpu.memory_space<vmem>>, vector<1x128x128xbf16>
    %34 = vector.shape_cast %33 : vector<1x128x128xbf16> to vector<128x128xbf16>
    %cst_22 = arith.constant dense<0.000000e+00> : vector<8x128xf32>
    %35 = tpu.matmul %32, %34, %cst_22 {dimension_numbers = #tpu.dot_dimension_numbers<[1], [0], [0], [1], [0, 0, 1, 1], [], []>} : vector<8x128xbf16>, vector<128x128xbf16>, vector<8x128xf32> -> vector<8x128xf32>
    %c3 = arith.constant 3 : index
    %c0_23 = arith.constant 0 : index
    %36 = vector.load %arg5[%c3, %c0_23] : memref<11x128xf32, #tpu.memory_space<vmem>>, vector<1x128xf32>
    %37 = vector.broadcast %36 : vector<1x128xf32> to vector<8x128xf32>
    %38 = arith.addf %35, %37 : vector<8x128xf32>
    %39 = arith.truncf %38 : vector<8x128xf32> to vector<8x128xbf16>
    %c3_24 = arith.constant 3 : index
    %c0_25 = arith.constant 0 : index
    %c0_26 = arith.constant 0 : index
    %40 = vector.load %arg3[%c3_24, %c0_25, %c0_26] : memref<10x128x128xbf16, #tpu.memory_space<vmem>>, vector<1x128x128xbf16>
    %41 = vector.shape_cast %40 : vector<1x128x128xbf16> to vector<128x128xbf16>
    %cst_27 = arith.constant dense<0.000000e+00> : vector<8x128xf32>
    %42 = tpu.matmul %39, %41, %cst_27 {dimension_numbers = #tpu.dot_dimension_numbers<[1], [0], [0], [1], [0, 0, 1, 1], [], []>} : vector<8x128xbf16>, vector<128x128xbf16>, vector<8x128xf32> -> vector<8x128xf32>
    %c0_28 = arith.constant 0 : index
    %c0_29 = arith.constant 0 : index
    %43 = vector.load %arg4[%c0_28, %c0_29] : memref<1x128xf32, #tpu.memory_space<vmem>>, vector<1x128xf32>
    %44 = vector.broadcast %4 : vector<8x1xf32> to vector<8x128xf32>
    %45 = vector.broadcast %43 : vector<1x128xf32> to vector<8x128xf32>
    %46 = arith.mulf %44, %45 : vector<8x128xf32>
    %47 = arith.addf %42, %46 : vector<8x128xf32>
    %48 = vector.shape_cast %47 : vector<8x128xf32> to vector<1x8x128xf32>
    %49 = vector.shape_cast %48 : vector<1x8x128xf32> to vector<1x1x8x128xf32>
    %50 = vector.shape_cast %48 : vector<1x8x128xf32> to vector<1x8x1x128xf32>
    %51 = vector.broadcast %49 : vector<1x1x8x128xf32> to vector<1x8x8x128xf32>
    %52 = vector.broadcast %50 : vector<1x8x1x128xf32> to vector<1x8x8x128xf32>
    %53 = arith.subf %51, %52 : vector<1x8x8x128xf32>
    %c4 = arith.constant 4 : index
    %c0_30 = arith.constant 0 : index
    %54 = vector.load %arg5[%c4, %c0_30] : memref<11x128xf32, #tpu.memory_space<vmem>>, vector<1x128xf32>
    %55 = vector.shape_cast %54 : vector<1x128xf32> to vector<1x1x1x128xf32>
    %56 = vector.broadcast %55 : vector<1x1x1x128xf32> to vector<1x8x8x128xf32>
    %57 = arith.addf %53, %56 : vector<1x8x8x128xf32>
    %cst_31 = arith.constant 0.000000e+00 : f32
    %58 = vector.broadcast %cst_31 : f32 to vector<1x8x8x128xf32>
    %59 = arith.maximumf %57, %58 : vector<1x8x8x128xf32>
    %60 = vector.shape_cast %59 : vector<1x8x8x128xf32> to vector<64x128xf32>
    %61 = arith.truncf %60 : vector<64x128xf32> to vector<64x128xbf16>
    %c4_32 = arith.constant 4 : index
    %c0_33 = arith.constant 0 : index
    %c0_34 = arith.constant 0 : index
    %62 = vector.load %arg3[%c4_32, %c0_33, %c0_34] : memref<10x128x128xbf16, #tpu.memory_space<vmem>>, vector<1x128x128xbf16>
    %63 = vector.shape_cast %62 : vector<1x128x128xbf16> to vector<128x128xbf16>
    %cst_35 = arith.constant dense<0.000000e+00> : vector<64x128xf32>
    %64 = tpu.matmul %61, %63, %cst_35 {dimension_numbers = #tpu.dot_dimension_numbers<[1], [0], [0], [1], [0, 0, 1, 1], [], []>} : vector<64x128xbf16>, vector<128x128xbf16>, vector<64x128xf32> -> vector<64x128xf32>
    %c5 = arith.constant 5 : index
    %c0_36 = arith.constant 0 : index
    %65 = vector.load %arg5[%c5, %c0_36] : memref<11x128xf32, #tpu.memory_space<vmem>>, vector<1x128xf32>
    %66 = vector.broadcast %65 : vector<1x128xf32> to vector<64x128xf32>
    %67 = arith.addf %64, %66 : vector<64x128xf32>
    %cst_37 = arith.constant 0.000000e+00 : f32
    %68 = vector.broadcast %cst_37 : f32 to vector<64x128xf32>
    %69 = arith.maximumf %67, %68 : vector<64x128xf32>
    %70 = vector.shape_cast %69 : vector<64x128xf32> to vector<1x8x8x128xf32>
    %71 = vector.shape_cast %5 : vector<1x8x2xf32> to vector<1x1x8x2xf32>
    %72 = vector.shape_cast %5 : vector<1x8x2xf32> to vector<1x8x1x2xf32>
    %73 = vector.broadcast %71 : vector<1x1x8x2xf32> to vector<1x8x8x2xf32>
    %74 = vector.broadcast %72 : vector<1x8x1x2xf32> to vector<1x8x8x2xf32>
    %75 = arith.subf %73, %74 : vector<1x8x8x2xf32>
    %76 = arith.mulf %75, %75 : vector<1x8x8x2xf32>
    %cst_38 = arith.constant dense<0.000000e+00> : vector<1x8x8xf32>
    %77 = vector.multi_reduction <add>, %76, %cst_38 [3] : vector<1x8x8x2xf32> to vector<1x8x8xf32>
    %cst_39 = arith.constant 2.250000e+00 : f32
    %78 = vector.broadcast %cst_39 : f32 to vector<1x8x8xf32>
    %79 = arith.cmpf ole, %77, %78 : vector<1x8x8xf32>
    %80 = vector.shape_cast %79 : vector<1x8x8xi1> to vector<1x8x8x1xi1>
    %cst_40 = arith.constant 0.000000e+00 : f32
    %81 = vector.shape_cast %80 : vector<1x8x8x1xi1> to vector<1x8x8x1xi1>
    %82 = vector.broadcast %81 : vector<1x8x8x1xi1> to vector<1x8x8x128xi1>
    %83 = vector.broadcast %cst_40 : f32 to vector<1x8x8x128xf32>
    %84 = arith.select %82, %70, %83 : vector<1x8x8x128xi1>, vector<1x8x8x128xf32>
    %cst_41 = arith.constant dense<0.000000e+00> : vector<1x8x128xf32>
    %85 = vector.multi_reduction <add>, %84, %cst_41 [2] : vector<1x8x8x128xf32> to vector<1x8x128xf32>
    %86 = vector.shape_cast %85 : vector<1x8x128xf32> to vector<8x128xf32>
    %87 = arith.extui %79 : vector<1x8x8xi1> to vector<1x8x8xi32>
    %88 = arith.sitofp %87 : vector<1x8x8xi32> to vector<1x8x8xf32>
    %cst_42 = arith.constant dense<0.000000e+00> : vector<1x8xf32>
    %89 = vector.multi_reduction <add>, %88, %cst_42 [2] : vector<1x8x8xf32> to vector<1x8xf32>
    %90 = vector.shape_cast %89 : vector<1x8xf32> to vector<8x1xf32>
    %91 = arith.truncf %86 : vector<8x128xf32> to vector<8x128xbf16>
    %c5_43 = arith.constant 5 : index
    %c0_44 = arith.constant 0 : index
    %c0_45 = arith.constant 0 : index
    %92 = vector.load %arg3[%c5_43, %c0_44, %c0_45] : memref<10x128x128xbf16, #tpu.memory_space<vmem>>, vector<1x128x128xbf16>
    %93 = vector.shape_cast %92 : vector<1x128x128xbf16> to vector<128x128xbf16>
    %cst_46 = arith.constant dense<0.000000e+00> : vector<8x128xf32>
    %94 = tpu.matmul %91, %93, %cst_46 {dimension_numbers = #tpu.dot_dimension_numbers<[1], [0], [0], [1], [0, 0, 1, 1], [], []>} : vector<8x128xbf16>, vector<128x128xbf16>, vector<8x128xf32> -> vector<8x128xf32>
    %c6 = arith.constant 6 : index
    %c0_47 = arith.constant 0 : index
    %95 = vector.load %arg5[%c6, %c0_47] : memref<11x128xf32, #tpu.memory_space<vmem>>, vector<1x128xf32>
    %96 = vector.broadcast %90 : vector<8x1xf32> to vector<8x128xf32>
    %97 = vector.broadcast %95 : vector<1x128xf32> to vector<8x128xf32>
    %98 = arith.mulf %96, %97 : vector<8x128xf32>
    %99 = arith.addf %94, %98 : vector<8x128xf32>
    %100 = arith.truncf %99 : vector<8x128xf32> to vector<8x128xbf16>
    %c6_48 = arith.constant 6 : index
    %c0_49 = arith.constant 0 : index
    %c0_50 = arith.constant 0 : index
    %101 = vector.load %arg3[%c6_48, %c0_49, %c0_50] : memref<10x128x128xbf16, #tpu.memory_space<vmem>>, vector<1x128x128xbf16>
    %102 = vector.shape_cast %101 : vector<1x128x128xbf16> to vector<128x128xbf16>
    %cst_51 = arith.constant dense<0.000000e+00> : vector<8x128xf32>
    %103 = tpu.matmul %100, %102, %cst_51 {dimension_numbers = #tpu.dot_dimension_numbers<[1], [0], [0], [1], [0, 0, 1, 1], [], []>} : vector<8x128xbf16>, vector<128x128xbf16>, vector<8x128xf32> -> vector<8x128xf32>
    %c7 = arith.constant 7 : index
    %c0_52 = arith.constant 0 : index
    %104 = vector.load %arg5[%c7, %c0_52] : memref<11x128xf32, #tpu.memory_space<vmem>>, vector<1x128xf32>
    %105 = vector.broadcast %104 : vector<1x128xf32> to vector<8x128xf32>
    %106 = arith.addf %103, %105 : vector<8x128xf32>
    %cst_53 = arith.constant 0.000000e+00 : f32
    %107 = vector.broadcast %cst_53 : f32 to vector<8x128xf32>
    %108 = arith.maximumf %106, %107 : vector<8x128xf32>
    %109 = arith.truncf %108 : vector<8x128xf32> to vector<8x128xbf16>
    %c7_54 = arith.constant 7 : index
    %c0_55 = arith.constant 0 : index
    %c0_56 = arith.constant 0 : index
    %110 = vector.load %arg3[%c7_54, %c0_55, %c0_56] : memref<10x128x128xbf16, #tpu.memory_space<vmem>>, vector<1x128x128xbf16>
    %111 = vector.shape_cast %110 : vector<1x128x128xbf16> to vector<128x128xbf16>
    %cst_57 = arith.constant dense<0.000000e+00> : vector<8x128xf32>
    %112 = tpu.matmul %109, %111, %cst_57 {dimension_numbers = #tpu.dot_dimension_numbers<[1], [0], [0], [1], [0, 0, 1, 1], [], []>} : vector<8x128xbf16>, vector<128x128xbf16>, vector<8x128xf32> -> vector<8x128xf32>
    %c8 = arith.constant 8 : index
    %c0_58 = arith.constant 0 : index
    %113 = vector.load %arg5[%c8, %c0_58] : memref<11x128xf32, #tpu.memory_space<vmem>>, vector<1x128xf32>
    %114 = vector.broadcast %113 : vector<1x128xf32> to vector<8x128xf32>
    %115 = arith.addf %112, %114 : vector<8x128xf32>
    %cst_59 = arith.constant 0.000000e+00 : f32
    %116 = vector.broadcast %cst_59 : f32 to vector<8x128xf32>
    %117 = arith.maximumf %115, %116 : vector<8x128xf32>
    %118 = arith.truncf %117 : vector<8x128xf32> to vector<8x128xbf16>
    %c8_60 = arith.constant 8 : index
    %c0_61 = arith.constant 0 : index
    %c0_62 = arith.constant 0 : index
    %119 = vector.load %arg3[%c8_60, %c0_61, %c0_62] : memref<10x128x128xbf16, #tpu.memory_space<vmem>>, vector<1x128x128xbf16>
    %120 = vector.shape_cast %119 : vector<1x128x128xbf16> to vector<128x128xbf16>
    %cst_63 = arith.constant dense<0.000000e+00> : vector<8x128xf32>
    %121 = tpu.matmul %118, %120, %cst_63 {dimension_numbers = #tpu.dot_dimension_numbers<[1], [0], [0], [1], [0, 0, 1, 1], [], []>} : vector<8x128xbf16>, vector<128x128xbf16>, vector<8x128xf32> -> vector<8x128xf32>
    %c9 = arith.constant 9 : index
    %c0_64 = arith.constant 0 : index
    %122 = vector.load %arg5[%c9, %c0_64] : memref<11x128xf32, #tpu.memory_space<vmem>>, vector<1x128xf32>
    %123 = vector.broadcast %122 : vector<1x128xf32> to vector<8x128xf32>
    %124 = arith.addf %121, %123 : vector<8x128xf32>
    %cst_65 = arith.constant 0.000000e+00 : f32
    %125 = vector.broadcast %cst_65 : f32 to vector<8x128xf32>
    %126 = arith.maximumf %124, %125 : vector<8x128xf32>
    %127 = arith.truncf %126 : vector<8x128xf32> to vector<8x128xbf16>
    %c9_66 = arith.constant 9 : index
    %c0_67 = arith.constant 0 : index
    %c0_68 = arith.constant 0 : index
    %128 = vector.load %arg3[%c9_66, %c0_67, %c0_68] : memref<10x128x128xbf16, #tpu.memory_space<vmem>>, vector<1x128x128xbf16>
    %129 = vector.shape_cast %128 : vector<1x128x128xbf16> to vector<128x128xbf16>
    %cst_69 = arith.constant dense<0.000000e+00> : vector<8x128xf32>
    %130 = tpu.matmul %127, %129, %cst_69 {dimension_numbers = #tpu.dot_dimension_numbers<[1], [0], [0], [1], [0, 0, 1, 1], [], []>} : vector<8x128xbf16>, vector<128x128xbf16>, vector<8x128xf32> -> vector<8x128xf32>
    %c10 = arith.constant 10 : index
    %c0_70 = arith.constant 0 : index
    %131 = vector.load %arg5[%c10, %c0_70] : memref<11x128xf32, #tpu.memory_space<vmem>>, vector<1x128xf32>
    %132 = vector.broadcast %131 : vector<1x128xf32> to vector<8x128xf32>
    %133 = arith.addf %130, %132 : vector<8x128xf32>
    %134 = vector.shape_cast %133 : vector<8x128xf32> to vector<1x8x128xf32>
    %c0_71 = arith.constant 0 : index
    %c0_72 = arith.constant 0 : index
    %c0_73 = arith.constant 0 : index
    %135 = vector.load %arg6[%c0_71, %c0_72, %c0_73] : memref<1x8x128xf32, #tpu.memory_space<vmem>>, vector<1x8x128xf32>
    tpu.vector_store %arg6[%c0_71, %c0_72, %c0_73], %134 {strides = array<i32>} : memref<1x8x128xf32, #tpu.memory_space<vmem>>, vector<1x8x128xf32>,
    return
  }
  func.func @transform_0(%arg0: i32) -> (i32, i32, i32) {
    %c0_i32 = arith.constant 0 : i32
    %c0_i32_0 = arith.constant 0 : i32
    %c0_i32_1 = arith.constant 0 : i32
    return %arg0, %c0_i32, %c0_i32_0 : i32, i32, i32
  }
  func.func @transform_1(%arg0: i32) -> (i32, i32) {
    %c0_i32 = arith.constant 0 : i32
    %c0_i32_0 = arith.constant 0 : i32
    %c0_i32_1 = arith.constant 0 : i32
    return %c0_i32, %c0_i32_0 : i32, i32
  }
  func.func @transform_2(%arg0: i32) -> (i32, i32, i32) {
    %c0_i32 = arith.constant 0 : i32
    %c0_i32_0 = arith.constant 0 : i32
    %c0_i32_1 = arith.constant 0 : i32
    %c0_i32_2 = arith.constant 0 : i32
    return %c0_i32, %c0_i32_0, %c0_i32_1 : i32, i32, i32
  }
  func.func @transform_3(%arg0: i32) -> (i32, i32) {
    %c0_i32 = arith.constant 0 : i32
    %c0_i32_0 = arith.constant 0 : i32
    %c0_i32_1 = arith.constant 0 : i32
    return %c0_i32, %c0_i32_0 : i32, i32
  }
  func.func @transform_4(%arg0: i32) -> (i32, i32) {
    %c0_i32 = arith.constant 0 : i32
    %c0_i32_0 = arith.constant 0 : i32
    %c0_i32_1 = arith.constant 0 : i32
    return %c0_i32, %c0_i32_0 : i32, i32
  }
  func.func @transform_5(%arg0: i32) -> (i32, i32, i32) {
    %c0_i32 = arith.constant 0 : i32
    %c0_i32_0 = arith.constant 0 : i32
    %c0_i32_1 = arith.constant 0 : i32
    return %arg0, %c0_i32, %c0_i32_0 : i32, i32, i32
  }
}

</mosaic_0001>

<llo_original>
// kernel: tpu_custom_call.1
$region0: #{tpu_custom_call.1}
  #allocation0 [shape = 'u32[]', space=smem, size = 0x4, offset = 0x4, fixed_abs, tag = 'smem constant byte address 0x4 - core index']
  #allocation1 [shape = 'u32[144,128]{1,0:T(1,128)}', space=vmem, size = 0x12000, scoped, tag = 'internal scratch']
  %s0 = inlined_call_operand.hbm [shape: f32[2,8,9], index: 0, kind: input, shape index: {}]
  %s1 = inlined_call_operand.hbm [shape: bf16[6,128], index: 1, kind: input, shape index: {}]
  %s2 = inlined_call_operand.hbm [shape: bf16[10,128,128], index: 2, kind: input, shape index: {}]
  %s3 = inlined_call_operand.vmem [shape: f32[1,128], index: 3, kind: input, shape index: {}]
  %s4 = inlined_call_operand.hbm [shape: f32[11,128], index: 4, kind: input, shape index: {}]
  %s5 = inlined_call_operand.hbm [shape: f32[2,8,128], index: 5, kind: output, shape index: {}]
  %s6 = sld [smem:[#allocation0]]
  $region69: #{tpu_custom_call.1} parent=0
    _
  %s8 = ssub.s32 1, %s6
  %s9 = scalar_select 0, %s8, %s6
  $region1: #{tpu_custom_call.1} parent=0
    #allocation2 [shape = 'u8[8192]{0}', space=vmem, size = 0x2000, scoped, tag = 'input window, operand 0']
    #allocation3 [shape = 's32[2]{0}', space=sflag, size = 0x8, scoped, tag = 'scoped memory for tpu_custom_call.1']
    #allocation4 [shape = 's32[2]{0}', space=sflag, size = 0x8, scoped, tag = 'scoped memory for tpu_custom_call.1']
    #allocation5 [shape = 'u8[2048]{0}', space=vmem, size = 0x800, scoped, tag = 'input window, operand 1, single buffered']
    #allocation6 [shape = 's32[1]{0}', space=sflag, size = 0x4, scoped, tag = 'scoped memory for tpu_custom_call.1']
    #allocation7 [shape = 'u8[327680]{0}', space=vmem, size = 0x50000, scoped, tag = 'input window, operand 2, single buffered']
    #allocation8 [shape = 'u8[8192]{0}', space=vmem, size = 0x2000, scoped, tag = 'input window, operand 4, single buffered']
    #allocation9 [shape = 's32[1]{0}', space=sflag, size = 0x4, scoped, tag = 'scoped memory for tpu_custom_call.1']
    #allocation10 [shape = 'u8[8192]{0}', space=vmem, size = 0x2000, scoped, tag = 'output window, operand 0']
    %10 = vsyncpa [#allocation3], 0
    %s11 = scalar_lea.sflag [#allocation3], 1
    %12 = vsyncpa %s11, 0
    %13 = vsyncpa [#allocation6], 0
    %14 = vsyncpa [#allocation9], 0
    %15 = vsyncpa [#allocation4], 0
    %s16 = scalar_lea.sflag [#allocation4], 1
    %17 = vsyncpa %s16, 0
    loop: start=0, step=1, limit=4
    $region2: #{tpu_custom_call.1} parent=1 // loop_pre_header
      _
    $region3: #{tpu_custom_call.1} parent=1 // loop_header
      %s19 = sphi 0, %s23
      %p20 = scmp.ge.s32.totalorder %s19, 4
      %s29 = sphi 0, %s31
      %s32 = sphi 0, %s29
      %s33 = sphi 0, %s32
      %s49 = sphi 0, %s33
      %s53 = sphi 0, %s53
      %s55 = sphi 0, %s53
      %s56 = sphi 0, %s55
      %s70 = sphi 0, %s56
      %s74 = sphi 0, %s74
      %s76 = sphi 0, %s74
      %s77 = sphi 0, %s76
      %s91 = sphi 0, %s77
      %s95 = sphi 0, %s95
      %s97 = sphi 0, %s95
      %s98 = sphi 0, %s97
      %s112 = sphi 0, %s98
      %s116 = sphi 0, %s116
      %s118 = sphi 0, %s116
      %s119 = sphi 0, %s118
      %s133 = sphi 0, %s119
      %s139 = sphi 0, %s141
      %s142 = sphi 0, %s139
      %s143 = sphi 0, %s142
      %s159 = sphi 0, %s143
    $region4: #{tpu_custom_call.1} parent=1 // loop_header_branch
      %22 = sbr.rel (%p20) target = $region8
    $region5: #{tpu_custom_call.1} parent=1 // loop_body
      %s24 = ssub.s32 %s19, 1
      %s25 = ssub.s32 %s19, 2
      %s26 = sadd.s32 %s19, 1
      %s27 = ssub.s32 %s19, %s26
      %p28 = scmp.eq.s32.totalorder %s27, 0
      %s30 = sadd.s32 %s29, 1
      %s31 = scalar_select %p28, %s29, %s30
      %p34 = pneg %p28
      %p35 = scmp.eq.s32.totalorder %s19, 1
      %p36 = por %p34, %p35
      %p37 = scmp.ne.s32.totalorder %s29, %s32
      %p38 = scmp.eq.s32.totalorder %s19, 0
      %p39 = por %p37, %p38
      %p40 = scmp.ne.s32.totalorder %s29, %s32
      %p41 = scmp.eq.s32.totalorder %s24, 1
      %p42 = por %p40, %p41
      %p43 = scmp.ne.s32.totalorder %s32, %s33
      %p44 = scmp.eq.s32.totalorder %s24, 0
      %p45 = por %p43, %p44
      %p46 = scmp.ne.s32.totalorder %s32, %s33
      %p47 = scmp.eq.s32.totalorder %s25, 1
      %p48 = por %p46, %p47
      %p50 = scmp.ne.s32.totalorder %s33, %s49
      %p51 = scmp.eq.s32.totalorder %s25, 0
      %p52 = por %p50, %p51
      %s54 = sadd.s32 %s53, 1
      %p57 = scmp.eq.s32.totalorder %s19, 1
      %p58 = scmp.ne.s32.totalorder %s53, %s55
      %p59 = scmp.eq.s32.totalorder %s19, 0
      %p60 = por %p58, %p59
      %p61 = scmp.ne.s32.totalorder %s53, %s55
      %p62 = scmp.eq.s32.totalorder %s24, 1
      %p63 = por %p61, %p62
      %p64 = scmp.ne.s32.totalorder %s55, %s56
      %p65 = scmp.eq.s32.totalorder %s24, 0
      %p66 = por %p64, %p65
      %p67 = scmp.ne.s32.totalorder %s55, %s56
      %p68 = scmp.eq.s32.totalorder %s25, 1
      %p69 = por %p67, %p68
      %p71 = scmp.ne.s32.totalorder %s56, %s70
      %p72 = scmp.eq.s32.totalorder %s25, 0
      %p73 = por %p71, %p72
      %s75 = sadd.s32 %s74, 1
      %p78 = scmp.eq.s32.totalorder %s19, 1
      %p79 = scmp.ne.s32.totalorder %s74, %s76
      %p80 = scmp.eq.s32.totalorder %s19, 0
      %p81 = por %p79, %p80
      %p82 = scmp.ne.s32.totalorder %s74, %s76
      %p83 = scmp.eq.s32.totalorder %s24, 1
      %p84 = por %p82, %p83
      %p85 = scmp.ne.s32.totalorder %s76, %s77
      %p86 = scmp.eq.s32.totalorder %s24, 0
      %p87 = por %p85, %p86
      %p88 = scmp.ne.s32.totalorder %s76, %s77
      %p89 = scmp.eq.s32.totalorder %s25, 1
      %p90 = por %p88, %p89
      %p92 = scmp.ne.s32.totalorder %s77, %s91
      %p93 = scmp.eq.s32.totalorder %s25, 0
      %p94 = por %p92, %p93
      %s96 = sadd.s32 %s95, 1
      %p99 = scmp.eq.s32.totalorder %s19, 1
      %p100 = scmp.ne.s32.totalorder %s95, %s97
      %p101 = scmp.eq.s32.totalorder %s19, 0
      %p102 = por %p100, %p101
      %p103 = scmp.ne.s32.totalorder %s95, %s97
      %p104 = scmp.eq.s32.totalorder %s24, 1
      %p105 = por %p103, %p104
      %p106 = scmp.ne.s32.totalorder %s97, %s98
      %p107 = scmp.eq.s32.totalorder %s24, 0
      %p108 = por %p106, %p107
      %p109 = scmp.ne.s32.totalorder %s97, %s98
      %p110 = scmp.eq.s32.totalorder %s25, 1
      %p111 = por %p109, %p110
      %p113 = scmp.ne.s32.totalorder %s98, %s112
      %p114 = scmp.eq.s32.totalorder %s25, 0
      %p115 = por %p113, %p114
      %s117 = sadd.s32 %s116, 1
      %p120 = scmp.eq.s32.totalorder %s19, 1
      %p121 = scmp.ne.s32.totalorder %s116, %s118
      %p122 = scmp.eq.s32.totalorder %s19, 0
      %p123 = por %p121, %p122
      %p124 = scmp.ne.s32.totalorder %s116, %s118
      %p125 = scmp.eq.s32.totalorder %s24, 1
      %p126 = por %p124, %p125
      %p127 = scmp.ne.s32.totalorder %s118, %s119
      %p128 = scmp.eq.s32.totalorder %s24, 0
      %p129 = por %p127, %p128
      %p130 = scmp.ne.s32.totalorder %s118, %s119
      %p131 = scmp.eq.s32.totalorder %s25, 1
      %p132 = por %p130, %p131
      %p134 = scmp.ne.s32.totalorder %s119, %s133
      %p135 = scmp.eq.s32.totalorder %s25, 0
      %p136 = por %p134, %p135
      %s137 = ssub.s32 %s19, %s26
      %p138 = scmp.eq.s32.totalorder %s137, 0
      %s140 = sadd.s32 %s139, 1
      %s141 = scalar_select %p138, %s139, %s140
      %p144 = pneg %p138
      %p145 = scmp.eq.s32.totalorder %s19, 1
      %p146 = por %p144, %p145
      %p147 = scmp.ne.s32.totalorder %s139, %s142
      %p148 = scmp.eq.s32.totalorder %s19, 0
      %p149 = por %p147, %p148
      %p150 = scmp.ne.s32.totalorder %s139, %s142
      %p151 = scmp.eq.s32.totalorder %s24, 1
      %p152 = por %p150, %p151
      %p153 = scmp.ne.s32.totalorder %s142, %s143
      %p154 = scmp.eq.s32.totalorder %s24, 0
      %p155 = por %p153, %p154
      %p156 = scmp.ne.s32.totalorder %s142, %s143
      %p157 = scmp.eq.s32.totalorder %s25, 1
      %p158 = por %p156, %p157
      %p160 = scmp.ne.s32.totalorder %s143, %s159
      %p161 = scmp.eq.s32.totalorder %s25, 0
      %p162 = por %p160, %p161
      %p163 = scmp.le.s32.totalorder 1, %s19
      %p164 = scmp.lt.s32.totalorder %s19, 3
      %p165 = pnand %p163, %p164
      %p166 = pneg %p165
      // Predicated region
      $region9: #{tpu_custom_call.1} parent=5 // pred_check
        _
      $region10: #{tpu_custom_call.1} parent=5 // pred_check_branch
        %168 = sbr.rel (%p165) target = $region12
      $region11: #{tpu_custom_call.1} parent=5 // pred_region
        %s169 = ssub.s32 %s19, 1
        // Predicated region
        $region13: #{tpu_custom_call.1} parent=11 // pred_check
          %p170 = pneg %p66
        $region14: #{tpu_custom_call.1} parent=11 // pred_check_branch
          %172 = sbr.rel (%p170) target = $region16
        $region15: #{tpu_custom_call.1} parent=11 // pred_region
          %s174 = ssub.s32 64, 64
          %175 = vsyncadd [#allocation6], %s174
          %s177 = sshll.u32 [#allocation5], 4
          %s178 = int_to_ptr.vmem [resolvable:$true] %s177
          %180 = dma.hbm_to_vmem [thread:$0]  %s1, 64, %s178, [#allocation6]
        $region16: #{tpu_custom_call.1} parent=11 // pred_fallthru
          _
        // Predicated region
        $region17: #{tpu_custom_call.1} parent=11 // pred_check
          %p181 = pneg %p87
        $region18: #{tpu_custom_call.1} parent=11 // pred_check_branch
          %183 = sbr.rel (%p181) target = $region20
        $region19: #{tpu_custom_call.1} parent=11 // pred_region
          %s185 = ssub.s32 10240, 10240
          %186 = vsyncadd [#allocation6], %s185
          %s187 = sshll.u32 [#allocation7], 4
          %s188 = int_to_ptr.vmem [resolvable:$true] %s187
          %193 = dma.hbm_to_vmem [thread:$0]  %s2, 10240, %s188, [#allocation6], 64, 64, 4
        $region20: #{tpu_custom_call.1} parent=11 // pred_fallthru
          _
        // Predicated region
        $region21: #{tpu_custom_call.1} parent=11 // pred_check
          %p194 = pneg %p108
        $region22: #{tpu_custom_call.1} parent=11 // pred_check_branch
          %196 = sbr.rel (%p194) target = $region24
        $region23: #{tpu_custom_call.1} parent=11 // pred_region
          _
        $region24: #{tpu_custom_call.1} parent=11 // pred_fallthru
          _
        // Predicated region
        $region25: #{tpu_custom_call.1} parent=11 // pred_check
          %p197 = pneg %p129
        $region26: #{tpu_custom_call.1} parent=11 // pred_check_branch
          %199 = sbr.rel (%p197) target = $region28
        $region27: #{tpu_custom_call.1} parent=11 // pred_region
          %s201 = ssub.s32 256, 256
          %202 = vsyncadd [#allocation9], %s201
          %s203 = sshll.u32 [#allocation8], 4
          %s204 = int_to_ptr.vmem [resolvable:$true] %s203
          %209 = dma.hbm_to_vmem [thread:$0]  %s4, 256, %s204, [#allocation9], 128, 128, 8
        $region28: #{tpu_custom_call.1} parent=11 // pred_fallthru
          _
      $region12: #{tpu_custom_call.1} parent=5 // pred_fallthru
        _
      %p210 = scmp.lt.s32.totalorder %s19, 2
      // Predicated region
      $region29: #{tpu_custom_call.1} parent=5 // pred_check
        %p211 = pneg %p210
      $region30: #{tpu_custom_call.1} parent=5 // pred_check_branch
        %213 = sbr.rel (%p211) target = $region32
      $region31: #{tpu_custom_call.1} parent=5 // pred_region
        // Predicated region
        $region33: #{tpu_custom_call.1} parent=31 // pred_check
          %p214 = pneg %p39
        $region34: #{tpu_custom_call.1} parent=31 // pred_check_branch
          %216 = sbr.rel (%p214) target = $region36
        $region35: #{tpu_custom_call.1} parent=31 // pred_region
          %s217 = sand.u32 %s29, 1
          %s218 = scalar_lea.sflag [#allocation3], %s217
          %s219 = sand.u32 %s29, 1
          %s220 = smul.addr %s219, 8
          %s221 = scalar_lea.vmem [#allocation2], %s220
          %s223 = ssub.s32 128, 128
          %224 = vsyncadd %s218, %s223
          %s225 = smul.addr %s19, 128
          %s226 = scalar_lea.hbm %s0, %s225
          %s228 = sshll.u32 %s221, 4
          %s229 = int_to_ptr.vmem [resolvable:$true] %s228
          %231 = dma.hbm_to_vmem [thread:$0]  %s226, 128, %s229, %s218
        $region36: #{tpu_custom_call.1} parent=31 // pred_fallthru
          _
      $region32: #{tpu_custom_call.1} parent=5 // pred_fallthru
        _
      %p232 = scmp.le.s32.totalorder 1, %s19
      %p233 = scmp.lt.s32.totalorder %s19, 3
      %p234 = pnand %p232, %p233
      %p235 = pneg %p234
      // Predicated region
      $region37: #{tpu_custom_call.1} parent=5 // pred_check
        _
      $region38: #{tpu_custom_call.1} parent=5 // pred_check_branch
        %237 = sbr.rel (%p234) target = $region40
      $region39: #{tpu_custom_call.1} parent=5 // pred_region
        %s238 = ssub.s32 %s19, 1
        %s239 = sand.u32 %s32, 1
        %s240 = scalar_lea.sflag [#allocation3], %s239
        %s241 = sand.u32 %s32, 1
        %s242 = smul.addr %s241, 8
        %s243 = scalar_lea.vmem [#allocation2], %s242
        // Predicated region
        $region41: #{tpu_custom_call.1} parent=39 // pred_check
          %p244 = pneg %p45
        $region42: #{tpu_custom_call.1} parent=39 // pred_check_branch
          %246 = sbr.rel (%p244) target = $region44
        $region43: #{tpu_custom_call.1} parent=39 // pred_region
          %247 = dma.done %s240, 128
        $region44: #{tpu_custom_call.1} parent=39 // pred_fallthru
          _
        // Predicated region
        $region45: #{tpu_custom_call.1} parent=39 // pred_check
          %p248 = pneg %p66
        $region46: #{tpu_custom_call.1} parent=39 // pred_check_branch
          %250 = sbr.rel (%p248) target = $region48
        $region47: #{tpu_custom_call.1} parent=39 // pred_region
          %251 = dma.done [#allocation6], 64
        $region48: #{tpu_custom_call.1} parent=39 // pred_fallthru
          _
        // Predicated region
        $region49: #{tpu_custom_call.1} parent=39 // pred_check
          %p252 = pneg %p87
        $region50: #{tpu_custom_call.1} parent=39 // pred_check_branch
          %254 = sbr.rel (%p252) target = $region52
        $region51: #{tpu_custom_call.1} parent=39 // pred_region
          %255 = dma.done [#allocation6], 10240
        $region52: #{tpu_custom_call.1} parent=39 // pred_fallthru
          _
        // Predicated region
        $region53: #{tpu_custom_call.1} parent=39 // pred_check
          %p256 = pneg %p129
        $region54: #{tpu_custom_call.1} parent=39 // pred_check_branch
          %258 = sbr.rel (%p256) target = $region56
        $region55: #{tpu_custom_call.1} parent=39 // pred_region
          %259 = dma.done [#allocation9], 256
        $region56: #{tpu_custom_call.1} parent=39 // pred_fallthru
          _
        %s260 = sand.u32 %s32, 1
        %s261 = scalar_lea.sflag [#allocation3], %s260
        %s262 = sand.u32 %s32, 1
        %s263 = smul.addr %s262, 8
        %s264 = scalar_lea.vmem [#allocation2], %s263
        %p265 = pneg %p45
        %p266 = pneg %p42
        %p267 = pneg %p66
        %p268 = pneg %p63
        %p269 = pneg %p87
        %p270 = pneg %p84
        %p271 = pneg %p108
        %p272 = pneg %p105
        %p273 = pneg %p129
        %p274 = pneg %p126
        %p275 = pneg %p155
        %p276 = pneg %p152
        %s277 = sand.u32 %s142, 1
        %s278 = scalar_lea.sflag [#allocation4], %s277
        %s279 = sand.u32 %s142, 1
        %s280 = smul.addr %s279, 8
        %s281 = scalar_lea.vmem [#allocation10], %s280
        %v283 = vld [vmem:[%s243] sm:$0xff]
        %v284 = vpack.c.bf16 %v283, %v283
        %v285 = vld [vmem:[#allocation5] sm:$0x7]
        %v286 = vld [vmem:[#allocation8] sm:$0x1]
        %v287 = vlaneseq
        %v288 = vshrl.u32 %v287, 7
        %v289 = vsub.s32 0, %v288
        %v290 = vrot.slane %v286, %v289
        %vm291 = vcmask 48128
        %v293 = vsel %vm291, %v284, 0
        %vm295 = vcmask 1042432
        %v297 = vsel %vm295, %v285, 0
        %299 = vmatprep.subr.bf16.mxu0 0
        %300 = vmatpush1.bf16.msra.mxu0 %v297
        %301 = vmatprep.subr.bf16.mxu0 0
        %302 = vmatpush1.bf16.msra.mxu0 0
        %303 = vmatprep.subr.bf16.mxu0 0
        %304 = vmatpush1.bf16.msra.mxu0 0
        %305 = vmatprep.subr.bf16.mxu0 0
        %306 = vmatpush1.bf16.msra.mxu0 0
        %307 = vmatprep.subr.bf16.mxu0 0
        %308 = vmatpush1.bf16.msra.mxu0 0
        %309 = vmatprep.subr.bf16.mxu0 0
        %310 = vmatpush1.bf16.msra.mxu0 0
        %311 = vmatprep.subr.bf16.mxu0 0
        %312 = vmatpush1.bf16.msra.mxu0 0
        %313 = vmatprep.subr.bf16.mxu0 0
        %314 = vmatpush1.bf16.msra.mxu0 0
        %315 = vmatprep.subr.bf16.mxu0 0
        %316 = vmatpush1.bf16.msra.mxu0 0
        %317 = vmatprep.subr.bf16.mxu0 0
        %318 = vmatpush1.bf16.msra.mxu0 0
        %319 = vmatprep.subr.bf16.mxu0 0
        %320 = vmatpush1.bf16.msra.mxu0 0
        %321 = vmatprep.subr.bf16.mxu0 0
        %322 = vmatpush1.bf16.msra.mxu0 0
        %323 = vmatprep.subr.bf16.mxu0 0
        %324 = vmatpush1.bf16.msra.mxu0 0
        %325 = vmatprep.subr.bf16.mxu0 0
        %326 = vmatpush1.bf16.msra.mxu0 0
        %327 = vmatprep.subr.bf16.mxu0 0
        %328 = vmatpush1.bf16.msra.mxu0 0
        %329 = vmatprep.subr.bf16.mxu0 0
        %330 = vmatpush1.bf16.msra.mxu0 0
        %331 = vmatprep.mubr.bf16.mxu0 0
        %332 = vmatmul.mubr.bf16.gmra.mrb[0].mxu0 %v293
        %v333 = vpop.f32.mrb[0].mxu0
        %v334 = vadd.f32 %v290, %v333
        %v335 = vpop.f32.mrb[0].mxu0
        %v336 = vpop.f32.mrb[0].mxu0
        %v337 = vpop.f32.mrb[0].mxu0
        %338 = vdwg.mxu0
        %v339 = vmax.f32 %v334, 0.0
        %v340 = vpack.c.bf16 %v339, %v339
        %v341 = vld [vmem:[#allocation7] sm:$0xf]
        %v342 = vld [vmem:[#allocation7 + $0x4] sm:$0xf]
        %v343 = vld [vmem:[#allocation7 + $0x8] sm:$0xf]
        %v344 = vld [vmem:[#allocation7 + $0xc] sm:$0xf]
        %v345 = vld [vmem:[#allocation7 + $0x10] sm:$0xf]
        %v346 = vld [vmem:[#allocation7 + $0x14] sm:$0xf]
        %v347 = vld [vmem:[#allocation7 + $0x18] sm:$0xf]
        %v348 = vld [vmem:[#allocation7 + $0x1c] sm:$0xf]
        %v349 = vld [vmem:[#allocation7 + $0x20] sm:$0xf]
        %v350 = vld [vmem:[#allocation7 + $0x24] sm:$0xf]
        %v351 = vld [vmem:[#allocation7 + $0x28] sm:$0xf]
        %v352 = vld [vmem:[#allocation7 + $0x2c] sm:$0xf]
        %v353 = vld [vmem:[#allocation7 + $0x30] sm:$0xf]
        %v354 = vld [vmem:[#allocation7 + $0x34] sm:$0xf]
        %v355 = vld [vmem:[#allocation7 + $0x38] sm:$0xf]
        %v356 = vld [vmem:[#allocation7 + $0x3c] sm:$0xf]
        %v357 = vld [vmem:[#allocation8 + $0x1] sm:$0x1]
        %v358 = vlaneseq
        %v359 = vshrl.u32 %v358, 7
        %v360 = vsub.s32 0, %v359
        %v361 = vrot.slane %v357, %v360
        %v378 = vunpack.c.l.b16 %v341
        %v379 = vunpack.c.l.b16 %v342
        %v380 = vunpack.c.l.b16 %v343
        %v381 = vunpack.c.l.b16 %v344
        %v382 = vunpack.c.l.b16 %v345
        %v383 = vunpack.c.l.b16 %v346
        %v384 = vunpack.c.l.b16 %v347
        %v385 = vunpack.c.l.b16 %v348
        %v386 = vunpack.c.l.b16 %v349
        %v387 = vunpack.c.l.b16 %v350
        %v388 = vunpack.c.l.b16 %v351
        %v389 = vunpack.c.l.b16 %v352
        %v390 = vunpack.c.l.b16 %v353
        %v391 = vunpack.c.l.b16 %v354
        %v392 = vunpack.c.l.b16 %v355
        %v393 = vunpack.c.l.b16 %v356
        %v394 = vpack.c.b16 %v379, %v378
        %v395 = vpack.c.b16 %v381, %v380
        %v396 = vpack.c.b16 %v383, %v382
        %v397 = vpack.c.b16 %v385, %v384
        %v398 = vpack.c.b16 %v387, %v386
        %v399 = vpack.c.b16 %v389, %v388
        %v400 = vpack.c.b16 %v391, %v390
        %v401 = vpack.c.b16 %v393, %v392
        %410 = vmatprep.subr.bf16.mxu0 0
        %411 = vmatpush1.bf16.msra.mxu0 %v394
        %412 = vmatprep.subr.bf16.mxu0 0
        %413 = vmatpush1.bf16.msra.mxu0 %v395
        %414 = vmatprep.subr.bf16.mxu0 0
        %415 = vmatpush1.bf16.msra.mxu0 %v396
        %416 = vmatprep.subr.bf16.mxu0 0
        %417 = vmatpush1.bf16.msra.mxu0 %v397
        %418 = vmatprep.subr.bf16.mxu0 0
        %419 = vmatpush1.bf16.msra.mxu0 %v398
        %420 = vmatprep.subr.bf16.mxu0 0
        %421 = vmatpush1.bf16.msra.mxu0 %v399
        %422 = vmatprep.subr.bf16.mxu0 0
        %423 = vmatpush1.bf16.msra.mxu0 %v400
        %424 = vmatprep.subr.bf16.mxu0 0
        %425 = vmatpush1.bf16.msra.mxu0 %v401
        %426 = vmatprep.subr.bf16.mxu0 0
        %427 = vmatpush1.bf16.msra.mxu0 0
        %428 = vmatprep.subr.bf16.mxu0 0
        %429 = vmatpush1.bf16.msra.mxu0 0
        %430 = vmatprep.subr.bf16.mxu0 0
        %431 = vmatpush1.bf16.msra.mxu0 0
        %432 = vmatprep.subr.bf16.mxu0 0
        %433 = vmatpush1.bf16.msra.mxu0 0
        %434 = vmatprep.subr.bf16.mxu0 0
        %435 = vmatpush1.bf16.msra.mxu0 0
        %436 = vmatprep.subr.bf16.mxu0 0
        %437 = vmatpush1.bf16.msra.mxu0 0
        %438 = vmatprep.subr.bf16.mxu0 0
        %439 = vmatpush1.bf16.msra.mxu0 0
        %440 = vmatprep.subr.bf16.mxu0 0
        %441 = vmatpush1.bf16.msra.mxu0 0
        %442 = vmatprep.mubr.bf16.mxu0 0
        %443 = vmatmul.mubr.bf16.gmra.mrb[0].mxu0 %v340
        %v444 = vpop.f32.mrb[0].mxu0
        %v445 = vadd.f32 %v361, %v444
        %v446 = vpop.f32.mrb[0].mxu0
        %v447 = vpop.f32.mrb[0].mxu0
        %v448 = vpop.f32.mrb[0].mxu0
        %449 = vdwg.mxu0
        %v450 = vmax.f32 %v445, 0.0
        %v451 = vpack.c.bf16 %v450, %v450
        %s452 = scalar_lea.vmem [#allocation7], 64
        %v453 = vld [vmem:[%s452] sm:$0xf]
        %v454 = vld [vmem:[%s452 + $0x4] sm:$0xf]
        %v455 = vld [vmem:[%s452 + $0x8] sm:$0xf]
        %v456 = vld [vmem:[%s452 + $0xc] sm:$0xf]
        %v457 = vld [vmem:[%s452 + $0x10] sm:$0xf]
        %v458 = vld [vmem:[%s452 + $0x14] sm:$0xf]
        %v459 = vld [vmem:[%s452 + $0x18] sm:$0xf]
        %v460 = vld [vmem:[%s452 + $0x1c] sm:$0xf]
        %v461 = vld [vmem:[%s452 + $0x20] sm:$0xf]
        %v462 = vld [vmem:[%s452 + $0x24] sm:$0xf]
        %v463 = vld [vmem:[%s452 + $0x28] sm:$0xf]
        %v464 = vld [vmem:[%s452 + $0x2c] sm:$0xf]
        %v465 = vld [vmem:[%s452 + $0x30] sm:$0xf]
        %v466 = vld [vmem:[%s452 + $0x34] sm:$0xf]
        %v467 = vld [vmem:[%s452 + $0x38] sm:$0xf]
        %v468 = vld [vmem:[%s452 + $0x3c] sm:$0xf]
        %v469 = vld [vmem:[#allocation8 + $0x2] sm:$0x1]
        %v470 = vlaneseq
        %v471 = vshrl.u32 %v470, 7
        %v472 = vsub.s32 0, %v471
        %v473 = vrot.slane %v469, %v472
        %v490 = vunpack.c.l.b16 %v453
        %v491 = vunpack.c.l.b16 %v454
        %v492 = vunpack.c.l.b16 %v455
        %v493 = vunpack.c.l.b16 %v456
        %v494 = vunpack.c.l.b16 %v457
        %v495 = vunpack.c.l.b16 %v458
        %v496 = vunpack.c.l.b16 %v459
        %v497 = vunpack.c.l.b16 %v460
        %v498 = vunpack.c.l.b16 %v461
        %v499 = vunpack.c.l.b16 %v462
        %v500 = vunpack.c.l.b16 %v463
        %v501 = vunpack.c.l.b16 %v464
        %v502 = vunpack.c.l.b16 %v465
        %v503 = vunpack.c.l.b16 %v466
        %v504 = vunpack.c.l.b16 %v467
        %v505 = vunpack.c.l.b16 %v468
        %v506 = vpack.c.b16 %v491, %v490
        %v507 = vpack.c.b16 %v493, %v492
        %v508 = vpack.c.b16 %v495, %v494
        %v509 = vpack.c.b16 %v497, %v496
        %v510 = vpack.c.b16 %v499, %v498
        %v511 = vpack.c.b16 %v501, %v500
        %v512 = vpack.c.b16 %v503, %v502
        %v513 = vpack.c.b16 %v505, %v504
        %522 = vmatprep.subr.bf16.mxu0 0
        %523 = vmatpush1.bf16.msra.mxu0 %v506
        %524 = vmatprep.subr.bf16.mxu0 0
        %525 = vmatpush1.bf16.msra.mxu0 %v507
        %526 = vmatprep.subr.bf16.mxu0 0
        %527 = vmatpush1.bf16.msra.mxu0 %v508
        %528 = vmatprep.subr.bf16.mxu0 0
        %529 = vmatpush1.bf16.msra.mxu0 %v509
        %530 = vmatprep.subr.bf16.mxu0 0
        %531 = vmatpush1.bf16.msra.mxu0 %v510
        %532 = vmatprep.subr.bf16.mxu0 0
        %533 = vmatpush1.bf16.msra.mxu0 %v511
        %534 = vmatprep.subr.bf16.mxu0 0
        %535 = vmatpush1.bf16.msra.mxu0 %v512
        %536 = vmatprep.subr.bf16.mxu0 0
        %537 = vmatpush1.bf16.msra.mxu0 %v513
        %538 = vmatprep.subr.bf16.mxu0 0
        %539 = vmatpush1.bf16.msra.mxu0 0
        %540 = vmatprep.subr.bf16.mxu0 0
        %541 = vmatpush1.bf16.msra.mxu0 0
        %542 = vmatprep.subr.bf16.mxu0 0
        %543 = vmatpush1.bf16.msra.mxu0 0
        %544 = vmatprep.subr.bf16.mxu0 0
        %545 = vmatpush1.bf16.msra.mxu0 0
        %546 = vmatprep.subr.bf16.mxu0 0
        %547 = vmatpush1.bf16.msra.mxu0 0
        %548 = vmatprep.subr.bf16.mxu0 0
        %549 = vmatpush1.bf16.msra.mxu0 0
        %550 = vmatprep.subr.bf16.mxu0 0
        %551 = vmatpush1.bf16.msra.mxu0 0
        %552 = vmatprep.subr.bf16.mxu0 0
        %553 = vmatpush1.bf16.msra.mxu0 0
        %554 = vmatprep.mubr.bf16.mxu0 0
        %555 = vmatmul.mubr.bf16.gmra.mrb[0].mxu0 %v451
        %v556 = vpop.f32.mrb[0].mxu0
        %v557 = vadd.f32 %v473, %v556
        %v558 = vpop.f32.mrb[0].mxu0
        %v559 = vpop.f32.mrb[0].mxu0
        %v560 = vpop.f32.mrb[0].mxu0
        %561 = vdwg.mxu0
        %v562 = vmax.f32 %v557, 0.0
        %v563 = vpack.c.bf16 %v562, %v562
        %s564 = scalar_lea.vmem [#allocation7], 128
        %v565 = vld [vmem:[%s564] sm:$0xf]
        %v566 = vld [vmem:[%s564 + $0x4] sm:$0xf]
        %v567 = vld [vmem:[%s564 + $0x8] sm:$0xf]
        %v568 = vld [vmem:[%s564 + $0xc] sm:$0xf]
        %v569 = vld [vmem:[%s564 + $0x10] sm:$0xf]
        %v570 = vld [vmem:[%s564 + $0x14] sm:$0xf]
        %v571 = vld [vmem:[%s564 + $0x18] sm:$0xf]
        %v572 = vld [vmem:[%s564 + $0x1c] sm:$0xf]
        %v573 = vld [vmem:[%s564 + $0x20] sm:$0xf]
        %v574 = vld [vmem:[%s564 + $0x24] sm:$0xf]
        %v575 = vld [vmem:[%s564 + $0x28] sm:$0xf]
        %v576 = vld [vmem:[%s564 + $0x2c] sm:$0xf]
        %v577 = vld [vmem:[%s564 + $0x30] sm:$0xf]
        %v578 = vld [vmem:[%s564 + $0x34] sm:$0xf]
        %v579 = vld [vmem:[%s564 + $0x38] sm:$0xf]
        %v580 = vld [vmem:[%s564 + $0x3c] sm:$0xf]
        %v581 = vld [vmem:[#allocation8 + $0x3] sm:$0x1]
        %v582 = vlaneseq
        %v583 = vshrl.u32 %v582, 7
        %v584 = vsub.s32 0, %v583
        %v585 = vrot.slane %v581, %v584
        %v602 = vunpack.c.l.b16 %v565
        %v603 = vunpack.c.l.b16 %v566
        %v604 = vunpack.c.l.b16 %v567
        %v605 = vunpack.c.l.b16 %v568
        %v606 = vunpack.c.l.b16 %v569
        %v607 = vunpack.c.l.b16 %v570
        %v608 = vunpack.c.l.b16 %v571
        %v609 = vunpack.c.l.b16 %v572
        %v610 = vunpack.c.l.b16 %v573
        %v611 = vunpack.c.l.b16 %v574
        %v612 = vunpack.c.l.b16 %v575
        %v613 = vunpack.c.l.b16 %v576
        %v614 = vunpack.c.l.b16 %v577
        %v615 = vunpack.c.l.b16 %v578
        %v616 = vunpack.c.l.b16 %v579
        %v617 = vunpack.c.l.b16 %v580
        %v618 = vpack.c.b16 %v603, %v602
        %v619 = vpack.c.b16 %v605, %v604
        %v620 = vpack.c.b16 %v607, %v606
        %v621 = vpack.c.b16 %v609, %v608
        %v622 = vpack.c.b16 %v611, %v610
        %v623 = vpack.c.b16 %v613, %v612
        %v624 = vpack.c.b16 %v615, %v614
        %v625 = vpack.c.b16 %v617, %v616
        %634 = vmatprep.subr.bf16.mxu0 0
        %635 = vmatpush1.bf16.msra.mxu0 %v618
        %636 = vmatprep.subr.bf16.mxu0 0
        %637 = vmatpush1.bf16.msra.mxu0 %v619
        %638 = vmatprep.subr.bf16.mxu0 0
        %639 = vmatpush1.bf16.msra.mxu0 %v620
        %640 = vmatprep.subr.bf16.mxu0 0
        %641 = vmatpush1.bf16.msra.mxu0 %v621
        %642 = vmatprep.subr.bf16.mxu0 0
        %643 = vmatpush1.bf16.msra.mxu0 %v622
        %644 = vmatprep.subr.bf16.mxu0 0
        %645 = vmatpush1.bf16.msra.mxu0 %v623
        %646 = vmatprep.subr.bf16.mxu0 0
        %647 = vmatpush1.bf16.msra.mxu0 %v624
        %648 = vmatprep.subr.bf16.mxu0 0
        %649 = vmatpush1.bf16.msra.mxu0 %v625
        %650 = vmatprep.subr.bf16.mxu0 0
        %651 = vmatpush1.bf16.msra.mxu0 0
        %652 = vmatprep.subr.bf16.mxu0 0
        %653 = vmatpush1.bf16.msra.mxu0 0
        %654 = vmatprep.subr.bf16.mxu0 0
        %655 = vmatpush1.bf16.msra.mxu0 0
        %656 = vmatprep.subr.bf16.mxu0 0
        %657 = vmatpush1.bf16.msra.mxu0 0
        %658 = vmatprep.subr.bf16.mxu0 0
        %659 = vmatpush1.bf16.msra.mxu0 0
        %660 = vmatprep.subr.bf16.mxu0 0
        %661 = vmatpush1.bf16.msra.mxu0 0
        %662 = vmatprep.subr.bf16.mxu0 0
        %663 = vmatpush1.bf16.msra.mxu0 0
        %664 = vmatprep.subr.bf16.mxu0 0
        %665 = vmatpush1.bf16.msra.mxu0 0
        %666 = vmatprep.mubr.bf16.mxu0 0
        %667 = vmatmul.mubr.bf16.gmra.mrb[0].mxu0 %v563
        %v668 = vpop.f32.mrb[0].mxu0
        %v669 = vadd.f32 %v585, %v668
        %v670 = vpop.f32.mrb[0].mxu0
        %v671 = vpop.f32.mrb[0].mxu0
        %v672 = vpop.f32.mrb[0].mxu0
        %673 = vdwg.mxu0
        %v674 = vpack.c.bf16 %v669, %v669
        %s675 = scalar_lea.vmem [#allocation7], 192
        %v676 = vld [vmem:[%s675] sm:$0xf]
        %v677 = vld [vmem:[%s675 + $0x4] sm:$0xf]
        %v678 = vld [vmem:[%s675 + $0x8] sm:$0xf]
        %v679 = vld [vmem:[%s675 + $0xc] sm:$0xf]
        %v680 = vld [vmem:[%s675 + $0x10] sm:$0xf]
        %v681 = vld [vmem:[%s675 + $0x14] sm:$0xf]
        %v682 = vld [vmem:[%s675 + $0x18] sm:$0xf]
        %v683 = vld [vmem:[%s675 + $0x1c] sm:$0xf]
        %v684 = vld [vmem:[%s675 + $0x20] sm:$0xf]
        %v685 = vld [vmem:[%s675 + $0x24] sm:$0xf]
        %v686 = vld [vmem:[%s675 + $0x28] sm:$0xf]
        %v687 = vld [vmem:[%s675 + $0x2c] sm:$0xf]
        %v688 = vld [vmem:[%s675 + $0x30] sm:$0xf]
        %v689 = vld [vmem:[%s675 + $0x34] sm:$0xf]
        %v690 = vld [vmem:[%s675 + $0x38] sm:$0xf]
        %v691 = vld [vmem:[%s675 + $0x3c] sm:$0xf]
        %v692 = vld [vmem:[%s3] sm:$0x1]
        %694 = vset.pattern.permute.xlu0 6
        %695 = vperm.xlu0 %694, %v283
        %v696 = vpop.permute.xlu0 %695
        %v699 = vlaneseq
        %v700 = vshrl.u32 %v699, 7
        %v701 = vsub.s32 0, %v700
        %v702 = vrot.slane %v692, %v701
        %v704 = vmul.f32 %v696, %v702
        %v721 = vunpack.c.l.b16 %v676
        %v722 = vunpack.c.l.b16 %v677
        %v723 = vunpack.c.l.b16 %v678
        %v724 = vunpack.c.l.b16 %v679
        %v725 = vunpack.c.l.b16 %v680
        %v726 = vunpack.c.l.b16 %v681
        %v727 = vunpack.c.l.b16 %v682
        %v728 = vunpack.c.l.b16 %v683
        %v729 = vunpack.c.l.b16 %v684
        %v730 = vunpack.c.l.b16 %v685
        %v731 = vunpack.c.l.b16 %v686
        %v732 = vunpack.c.l.b16 %v687
        %v733 = vunpack.c.l.b16 %v688
        %v734 = vunpack.c.l.b16 %v689
        %v735 = vunpack.c.l.b16 %v690
        %v736 = vunpack.c.l.b16 %v691
        %v737 = vpack.c.b16 %v722, %v721
        %v738 = vpack.c.b16 %v724, %v723
        %v739 = vpack.c.b16 %v726, %v725
        %v740 = vpack.c.b16 %v728, %v727
        %v741 = vpack.c.b16 %v730, %v729
        %v742 = vpack.c.b16 %v732, %v731
        %v743 = vpack.c.b16 %v734, %v733
        %v744 = vpack.c.b16 %v736, %v735
        %753 = vmatprep.subr.bf16.mxu0 0
        %754 = vmatpush1.bf16.msra.mxu0 %v737
        %755 = vmatprep.subr.bf16.mxu0 0
        %756 = vmatpush1.bf16.msra.mxu0 %v738
        %757 = vmatprep.subr.bf16.mxu0 0
        %758 = vmatpush1.bf16.msra.mxu0 %v739
        %759 = vmatprep.subr.bf16.mxu0 0
        %760 = vmatpush1.bf16.msra.mxu0 %v740
        %761 = vmatprep.subr.bf16.mxu0 0
        %762 = vmatpush1.bf16.msra.mxu0 %v741
        %763 = vmatprep.subr.bf16.mxu0 0
        %764 = vmatpush1.bf16.msra.mxu0 %v742
        %765 = vmatprep.subr.bf16.mxu0 0
        %766 = vmatpush1.bf16.msra.mxu0 %v743
        %767 = vmatprep.subr.bf16.mxu0 0
        %768 = vmatpush1.bf16.msra.mxu0 %v744
        %769 = vmatprep.subr.bf16.mxu0 0
        %770 = vmatpush1.bf16.msra.mxu0 0
        %771 = vmatprep.subr.bf16.mxu0 0
        %772 = vmatpush1.bf16.msra.mxu0 0
        %773 = vmatprep.subr.bf16.mxu0 0
        %774 = vmatpush1.bf16.msra.mxu0 0
        %775 = vmatprep.subr.bf16.mxu0 0
        %776 = vmatpush1.bf16.msra.mxu0 0
        %777 = vmatprep.subr.bf16.mxu0 0
        %778 = vmatpush1.bf16.msra.mxu0 0
        %779 = vmatprep.subr.bf16.mxu0 0
        %780 = vmatpush1.bf16.msra.mxu0 0
        %781 = vmatprep.subr.bf16.mxu0 0
        %782 = vmatpush1.bf16.msra.mxu0 0
        %783 = vmatprep.subr.bf16.mxu0 0
        %784 = vmatpush1.bf16.msra.mxu0 0
        %785 = vmatprep.mubr.bf16.mxu0 0
        %786 = vmatmul.mubr.bf16.gmra.mrb[0].mxu0 %v674
        %v787 = vpop.f32.mrb[0].mxu0
        %v788 = vadd.f32 %v704, %v787
        %v789 = vpop.f32.mrb[0].mxu0
        %v790 = vpop.f32.mrb[0].mxu0
        %v791 = vpop.f32.mrb[0].mxu0
        %792 = vdwg.mxu0
        %v794 = vcombine.high %v788, %v788
        %v796 = vunpack.c.l.s4 1966171168
        %v797 = vunpack.c.0.s8 %v796
        %v798 = vlaneseq
        %v799 = vshrl.u32 %v798, 7
        %v800 = vsub.s32 %v797, %v799
        %v801 = vrot.slane %v788, %v800
        %v803 = vunpack.c.l.s4 1966171168
        %v804 = vunpack.c.0.s8 %v803
        %v805 = vlaneseq
        %v806 = vshrl.u32 %v805, 7
        %v807 = vsub.s32 %v804, %v806
        %v808 = vrot.slane %v794, %v807
        %v809 = vcombine.high %v801, %v801
        %v810 = vcombine.high %v808, %v808
        %v812 = vunpack.c.l.s4 1966171168
        %v813 = vunpack.c.0.s8 %v812
        %v814 = vlaneseq
        %v815 = vshrl.u32 %v814, 7
        %v816 = vsub.s32 %v813, %v815
        %v817 = vrot.slane %v801, %v816
        %v819 = vunpack.c.l.s4 1966171168
        %v820 = vunpack.c.0.s8 %v819
        %v821 = vlaneseq
        %v822 = vshrl.u32 %v821, 7
        %v823 = vsub.s32 %v820, %v822
        %v824 = vrot.slane %v808, %v823
        %v826 = vunpack.c.l.s4 1966171168
        %v827 = vunpack.c.0.s8 %v826
        %v828 = vlaneseq
        %v829 = vshrl.u32 %v828, 7
        %v830 = vsub.s32 %v827, %v829
        %v831 = vrot.slane %v809, %v830
        %v833 = vunpack.c.l.s4 1966171168
        %v834 = vunpack.c.0.s8 %v833
        %v835 = vlaneseq
        %v836 = vshrl.u32 %v835, 7
        %v837 = vsub.s32 %v834, %v836
        %v838 = vrot.slane %v810, %v837
        %v839 = vcombine.high %v817, %v817
        %v840 = vcombine.high %v824, %v824
        %v841 = vcombine.high %v831, %v831
        %v842 = vcombine.high %v838, %v838
        %v843 = vlaneseq
        %v844 = vshrl.u32 %v843, 7
        %v845 = vsub.s32 0, %v844
        %v846 = vrot.slane %v817, %v845
        %v847 = vlaneseq
        %v848 = vshrl.u32 %v847, 7
        %v849 = vsub.s32 0, %v848
        %v850 = vrot.slane %v831, %v849
        %v851 = vlaneseq
        %v852 = vshrl.u32 %v851, 7
        %v853 = vsub.s32 0, %v852
        %v854 = vrot.slane %v839, %v853
        %v855 = vlaneseq
        %v856 = vshrl.u32 %v855, 7
        %v857 = vsub.s32 0, %v856
        %v858 = vrot.slane %v841, %v857
        %v859 = vlaneseq
        %v860 = vshrl.u32 %v859, 7
        %v861 = vsub.s32 0, %v860
        %v862 = vrot.slane %v824, %v861
        %v863 = vlaneseq
        %v864 = vshrl.u32 %v863, 7
        %v865 = vsub.s32 0, %v864
        %v866 = vrot.slane %v838, %v865
        %v867 = vlaneseq
        %v868 = vshrl.u32 %v867, 7
        %v869 = vsub.s32 0, %v868
        %v870 = vrot.slane %v840, %v869
        %v871 = vlaneseq
        %v872 = vshrl.u32 %v871, 7
        %v873 = vsub.s32 0, %v872
        %v874 = vrot.slane %v842, %v873
        %v883 = vsub.f32 %v788, %v846
        %v884 = vsub.f32 %v788, %v850
        %v885 = vsub.f32 %v788, %v854
        %v886 = vsub.f32 %v788, %v858
        %v887 = vsub.f32 %v788, %v862
        %v888 = vsub.f32 %v788, %v866
        %v889 = vsub.f32 %v788, %v870
        %v890 = vsub.f32 %v788, %v874
        %v891 = vld [vmem:[#allocation8 + $0x4] sm:$0x1]
        %v892 = vlaneseq
        %v893 = vshrl.u32 %v892, 7
        %v894 = vsub.s32 0, %v893
        %v895 = vrot.slane %v891, %v894
        %v896 = vadd.f32 %v883, %v895
        %v897 = vadd.f32 %v884, %v895
        %v898 = vadd.f32 %v885, %v895
        %v899 = vadd.f32 %v886, %v895
        %v900 = vadd.f32 %v887, %v895
        %v901 = vadd.f32 %v888, %v895
        %v902 = vadd.f32 %v889, %v895
        %v903 = vadd.f32 %v890, %v895
        %v904 = vmax.f32 %v896, 0.0
        %v905 = vmax.f32 %v897, 0.0
        %v906 = vmax.f32 %v898, 0.0
        %v907 = vmax.f32 %v899, 0.0
        %v908 = vmax.f32 %v900, 0.0
        %v909 = vmax.f32 %v901, 0.0
        %v910 = vmax.f32 %v902, 0.0
        %v911 = vmax.f32 %v903, 0.0
        %v912 = vpack.c.bf16 %v905, %v904
        %v913 = vpack.c.bf16 %v907, %v906
        %v914 = vpack.c.bf16 %v909, %v908
        %v915 = vpack.c.bf16 %v911, %v910
        %s916 = scalar_lea.vmem [#allocation7], 256
        %v917 = vld [vmem:[%s916] sm:$0xf]
        %v918 = vld [vmem:[%s916 + $0x4] sm:$0xf]
        %v919 = vld [vmem:[%s916 + $0x8] sm:$0xf]
        %v920 = vld [vmem:[%s916 + $0xc] sm:$0xf]
        %v921 = vld [vmem:[%s916 + $0x10] sm:$0xf]
        %v922 = vld [vmem:[%s916 + $0x14] sm:$0xf]
        %v923 = vld [vmem:[%s916 + $0x18] sm:$0xf]
        %v924 = vld [vmem:[%s916 + $0x1c] sm:$0xf]
        %v925 = vld [vmem:[%s916 + $0x20] sm:$0xf]
        %v926 = vld [vmem:[%s916 + $0x24] sm:$0xf]
        %v927 = vld [vmem:[%s916 + $0x28] sm:$0xf]
        %v928 = vld [vmem:[%s916 + $0x2c] sm:$0xf]
        %v929 = vld [vmem:[%s916 + $0x30] sm:$0xf]
        %v930 = vld [vmem:[%s916 + $0x34] sm:$0xf]
        %v931 = vld [vmem:[%s916 + $0x38] sm:$0xf]
        %v932 = vld [vmem:[%s916 + $0x3c] sm:$0xf]
        %v933 = vld [vmem:[#allocation8 + $0x5] sm:$0x1]
        %v934 = vlaneseq
        %v935 = vshrl.u32 %v934, 7
        %v936 = vsub.s32 0, %v935
        %v937 = vrot.slane %v933, %v936
        %v954 = vunpack.c.l.b16 %v917
        %v955 = vunpack.c.l.b16 %v918
        %v956 = vunpack.c.l.b16 %v919
        %v957 = vunpack.c.l.b16 %v920
        %v958 = vunpack.c.l.b16 %v921
        %v959 = vunpack.c.l.b16 %v922
        %v960 = vunpack.c.l.b16 %v923
        %v961 = vunpack.c.l.b16 %v924
        %v962 = vunpack.c.l.b16 %v925
        %v963 = vunpack.c.l.b16 %v926
        %v964 = vunpack.c.l.b16 %v927
        %v965 = vunpack.c.l.b16 %v928
        %v966 = vunpack.c.l.b16 %v929
        %v967 = vunpack.c.l.b16 %v930
        %v968 = vunpack.c.l.b16 %v931
        %v969 = vunpack.c.l.b16 %v932
        %v970 = vpack.c.b16 %v955, %v954
        %v971 = vpack.c.b16 %v957, %v956
        %v972 = vpack.c.b16 %v959, %v958
        %v973 = vpack.c.b16 %v961, %v960
        %v974 = vpack.c.b16 %v963, %v962
        %v975 = vpack.c.b16 %v965, %v964
        %v976 = vpack.c.b16 %v967, %v966
        %v977 = vpack.c.b16 %v969, %v968
        %986 = vmatprep.subr.bf16.mxu0 0
        %987 = vmatpush1.bf16.msra.mxu0 %v970
        %988 = vmatprep.subr.bf16.mxu0 0
        %989 = vmatpush1.bf16.msra.mxu0 %v971
        %990 = vmatprep.subr.bf16.mxu0 0
        %991 = vmatpush1.bf16.msra.mxu0 %v972
        %992 = vmatprep.subr.bf16.mxu0 0
        %993 = vmatpush1.bf16.msra.mxu0 %v973
        %994 = vmatprep.subr.bf16.mxu0 0
        %995 = vmatpush1.bf16.msra.mxu0 %v974
        %996 = vmatprep.subr.bf16.mxu0 0
        %997 = vmatpush1.bf16.msra.mxu0 %v975
        %998 = vmatprep.subr.bf16.mxu0 0
        %999 = vmatpush1.bf16.msra.mxu0 %v976
        %1000 = vmatprep.subr.bf16.mxu0 0
        %1001 = vmatpush1.bf16.msra.mxu0 %v977
        %1002 = vmatprep.subr.bf16.mxu0 0
        %1003 = vmatpush1.bf16.msra.mxu0 0
        %1004 = vmatprep.subr.bf16.mxu0 0
        %1005 = vmatpush1.bf16.msra.mxu0 0
        %1006 = vmatprep.subr.bf16.mxu0 0
        %1007 = vmatpush1.bf16.msra.mxu0 0
        %1008 = vmatprep.subr.bf16.mxu0 0
        %1009 = vmatpush1.bf16.msra.mxu0 0
        %1010 = vmatprep.subr.bf16.mxu0 0
        %1011 = vmatpush1.bf16.msra.mxu0 0
        %1012 = vmatprep.subr.bf16.mxu0 0
        %1013 = vmatpush1.bf16.msra.mxu0 0
        %1014 = vmatprep.subr.bf16.mxu0 0
        %1015 = vmatpush1.bf16.msra.mxu0 0
        %1016 = vmatprep.subr.bf16.mxu0 0
        %1017 = vmatpush1.bf16.msra.mxu0 0
        %1018 = vmatprep.mubr.bf16.mxu0 0
        %1019 = vmatmul.mubr.bf16.gmra.mrb[0].mxu0 %v912
        %v1020 = vpop.f32.mrb[0].mxu0
        %v1021 = vadd.f32 %v937, %v1020
        %v1022 = vpop.f32.mrb[0].mxu0
        %v1023 = vpop.f32.mrb[0].mxu0
        %v1024 = vadd.f32 %v937, %v1023
        %v1025 = vpop.f32.mrb[0].mxu0
        %1026 = vmatprep.mubr.bf16.mxu0 0
        %1027 = vmatmul.mubr.bf16.gmra.mrb[0].mxu0 %v913
        %v1028 = vpop.f32.mrb[0].mxu0
        %v1029 = vadd.f32 %v937, %v1028
        %v1030 = vpop.f32.mrb[0].mxu0
        %v1031 = vpop.f32.mrb[0].mxu0
        %v1032 = vadd.f32 %v937, %v1031
        %v1033 = vpop.f32.mrb[0].mxu0
        %1034 = vmatprep.mubr.bf16.mxu0 0
        %1035 = vmatmul.mubr.bf16.gmra.mrb[0].mxu0 %v914
        %v1036 = vpop.f32.mrb[0].mxu0
        %v1037 = vadd.f32 %v937, %v1036
        %v1038 = vpop.f32.mrb[0].mxu0
        %v1039 = vpop.f32.mrb[0].mxu0
        %v1040 = vadd.f32 %v937, %v1039
        %v1041 = vpop.f32.mrb[0].mxu0
        %1042 = vmatprep.mubr.bf16.mxu0 0
        %1043 = vmatmul.mubr.bf16.gmra.mrb[0].mxu0 %v915
        %v1044 = vpop.f32.mrb[0].mxu0
        %v1045 = vadd.f32 %v937, %v1044
        %v1046 = vpop.f32.mrb[0].mxu0
        %v1047 = vpop.f32.mrb[0].mxu0
        %v1048 = vadd.f32 %v937, %v1047
        %v1049 = vpop.f32.mrb[0].mxu0
        %1050 = vdwg.mxu0
        %v1051 = vmax.f32 %v1021, 0.0
        %v1052 = vmax.f32 %v1024, 0.0
        %v1053 = vmax.f32 %v1029, 0.0
        %v1054 = vmax.f32 %v1032, 0.0
        %v1055 = vmax.f32 %v1037, 0.0
        %v1056 = vmax.f32 %v1040, 0.0
        %v1057 = vmax.f32 %v1045, 0.0
        %v1058 = vmax.f32 %v1048, 0.0
        %v1059 = vcombine.high %v283, %v283
        %v1061 = vunpack.c.l.s4 1966171168
        %v1062 = vunpack.c.0.s8 %v1061
        %v1063 = vlaneseq
        %v1064 = vshrl.u32 %v1063, 7
        %v1065 = vsub.s32 %v1062, %v1064
        %v1066 = vrot.slane %v283, %v1065
        %v1068 = vunpack.c.l.s4 1966171168
        %v1069 = vunpack.c.0.s8 %v1068
        %v1070 = vlaneseq
        %v1071 = vshrl.u32 %v1070, 7
        %v1072 = vsub.s32 %v1069, %v1071
        %v1073 = vrot.slane %v1059, %v1072
        %v1074 = vcombine.high %v1066, %v1066
        %v1075 = vcombine.high %v1073, %v1073
        %v1077 = vunpack.c.l.s4 1966171168
        %v1078 = vunpack.c.0.s8 %v1077
        %v1079 = vlaneseq
        %v1080 = vshrl.u32 %v1079, 7
        %v1081 = vsub.s32 %v1078, %v1080
        %v1082 = vrot.slane %v1066, %v1081
        %v1084 = vunpack.c.l.s4 1966171168
        %v1085 = vunpack.c.0.s8 %v1084
        %v1086 = vlaneseq
        %v1087 = vshrl.u32 %v1086, 7
        %v1088 = vsub.s32 %v1085, %v1087
        %v1089 = vrot.slane %v1073, %v1088
        %v1091 = vunpack.c.l.s4 1966171168
        %v1092 = vunpack.c.0.s8 %v1091
        %v1093 = vlaneseq
        %v1094 = vshrl.u32 %v1093, 7
        %v1095 = vsub.s32 %v1092, %v1094
        %v1096 = vrot.slane %v1074, %v1095
        %v1098 = vunpack.c.l.s4 1966171168
        %v1099 = vunpack.c.0.s8 %v1098
        %v1100 = vlaneseq
        %v1101 = vshrl.u32 %v1100, 7
        %v1102 = vsub.s32 %v1099, %v1101
        %v1103 = vrot.slane %v1075, %v1102
        %v1104 = vcombine.high %v1082, %v1082
        %v1105 = vcombine.high %v1089, %v1089
        %v1106 = vcombine.high %v1096, %v1096
        %v1107 = vcombine.high %v1103, %v1103
        %v1108 = vlaneseq
        %v1109 = vshrl.u32 %v1108, 7
        %v1110 = vsub.s32 0, %v1109
        %v1111 = vrot.slane %v1082, %v1110
        %v1112 = vlaneseq
        %v1113 = vshrl.u32 %v1112, 7
        %v1114 = vsub.s32 0, %v1113
        %v1115 = vrot.slane %v1096, %v1114
        %v1116 = vlaneseq
        %v1117 = vshrl.u32 %v1116, 7
        %v1118 = vsub.s32 0, %v1117
        %v1119 = vrot.slane %v1104, %v1118
        %v1120 = vlaneseq
        %v1121 = vshrl.u32 %v1120, 7
        %v1122 = vsub.s32 0, %v1121
        %v1123 = vrot.slane %v1106, %v1122
        %v1124 = vlaneseq
        %v1125 = vshrl.u32 %v1124, 7
        %v1126 = vsub.s32 0, %v1125
        %v1127 = vrot.slane %v1089, %v1126
        %v1128 = vlaneseq
        %v1129 = vshrl.u32 %v1128, 7
        %v1130 = vsub.s32 0, %v1129
        %v1131 = vrot.slane %v1103, %v1130
        %v1132 = vlaneseq
        %v1133 = vshrl.u32 %v1132, 7
        %v1134 = vsub.s32 0, %v1133
        %v1135 = vrot.slane %v1105, %v1134
        %v1136 = vlaneseq
        %v1137 = vshrl.u32 %v1136, 7
        %v1138 = vsub.s32 0, %v1137
        %v1139 = vrot.slane %v1107, %v1138
        %v1148 = vsub.f32 %v283, %v1111
        %v1149 = vsub.f32 %v283, %v1115
        %v1150 = vsub.f32 %v283, %v1119
        %v1151 = vsub.f32 %v283, %v1123
        %v1152 = vsub.f32 %v283, %v1127
        %v1153 = vsub.f32 %v283, %v1131
        %v1154 = vsub.f32 %v283, %v1135
        %v1155 = vsub.f32 %v283, %v1139
        %v1156 = vmul.f32 %v1148, %v1148
        %v1157 = vmul.f32 %v1149, %v1149
        %v1158 = vmul.f32 %v1150, %v1150
        %v1159 = vmul.f32 %v1151, %v1151
        %v1160 = vmul.f32 %v1152, %v1152
        %v1161 = vmul.f32 %v1153, %v1153
        %v1162 = vmul.f32 %v1154, %v1154
        %v1163 = vmul.f32 %v1155, %v1155
        %1172 = vrot.lane.b32.xlu0 %v1156, 121
        %v1173 = vpop.permute.xlu0 %1172
        %1174 = vrot.lane.b32.xlu0 %v1157, 121
        %v1175 = vpop.permute.xlu0 %1174
        %1176 = vrot.lane.b32.xlu0 %v1158, 121
        %v1177 = vpop.permute.xlu0 %1176
        %1178 = vrot.lane.b32.xlu0 %v1159, 121
        %v1179 = vpop.permute.xlu0 %1178
        %1180 = vrot.lane.b32.xlu0 %v1160, 121
        %v1181 = vpop.permute.xlu0 %1180
        %1182 = vrot.lane.b32.xlu0 %v1161, 121
        %v1183 = vpop.permute.xlu0 %1182
        %1184 = vrot.lane.b32.xlu0 %v1162, 121
        %v1185 = vpop.permute.xlu0 %1184
        %1186 = vrot.lane.b32.xlu0 %v1163, 121
        %v1187 = vpop.permute.xlu0 %1186
        %vm1196 = vcmask 15360
        %v1197 = vsel %vm1196, %v1173, 0.0
        %1198 = vadd.xlane.f32.xlu0 %v1197
        %v1199 = vpop.xlane.xlu0 %1198
        %v1200 = vsel %vm1196, %v1175, 0.0
        %1201 = vadd.xlane.f32.xlu0 %v1200
        %v1202 = vpop.xlane.xlu0 %1201
        %v1203 = vsel %vm1196, %v1177, 0.0
        %1204 = vadd.xlane.f32.xlu0 %v1203
        %v1205 = vpop.xlane.xlu0 %1204
        %v1206 = vsel %vm1196, %v1179, 0.0
        %1207 = vadd.xlane.f32.xlu0 %v1206
        %v1208 = vpop.xlane.xlu0 %1207
        %v1209 = vsel %vm1196, %v1181, 0.0
        %1210 = vadd.xlane.f32.xlu0 %v1209
        %v1211 = vpop.xlane.xlu0 %1210
        %v1212 = vsel %vm1196, %v1183, 0.0
        %1213 = vadd.xlane.f32.xlu0 %v1212
        %v1214 = vpop.xlane.xlu0 %1213
        %v1215 = vsel %vm1196, %v1185, 0.0
        %1216 = vadd.xlane.f32.xlu0 %v1215
        %v1217 = vpop.xlane.xlu0 %1216
        %v1218 = vsel %vm1196, %v1187, 0.0
        %1219 = vadd.xlane.f32.xlu0 %v1218
        %v1220 = vpop.xlane.xlu0 %1219
        %vm1221 = vcmp.le.f32.partialorder %v1199, 2.25
        %vm1222 = vcmp.le.f32.partialorder %v1202, 2.25
        %vm1223 = vcmp.le.f32.partialorder %v1205, 2.25
        %vm1224 = vcmp.le.f32.partialorder %v1208, 2.25
        %vm1225 = vcmp.le.f32.partialorder %v1211, 2.25
        %vm1226 = vcmp.le.f32.partialorder %v1214, 2.25
        %vm1227 = vcmp.le.f32.partialorder %v1217, 2.25
        %vm1228 = vcmp.le.f32.partialorder %v1220, 2.25
        %v1229 = vsel %vm1221, 1, 0
        %v1230 = vsel %vm1222, 1, 0
        %v1231 = vsel %vm1223, 1, 0
        %v1232 = vsel %vm1224, 1, 0
        %v1233 = vsel %vm1225, 1, 0
        %v1234 = vsel %vm1226, 1, 0
        %v1235 = vsel %vm1227, 1, 0
        %v1236 = vsel %vm1228, 1, 0
        %vm1237 = vcmp.eq.s32.totalorder %v1229, 1
        %vm1238 = vcmp.eq.s32.totalorder %v1230, 1
        %vm1239 = vcmp.eq.s32.totalorder %v1231, 1
        %vm1240 = vcmp.eq.s32.totalorder %v1232, 1
        %vm1241 = vcmp.eq.s32.totalorder %v1233, 1
        %vm1242 = vcmp.eq.s32.totalorder %v1234, 1
        %vm1243 = vcmp.eq.s32.totalorder %v1235, 1
        %vm1244 = vcmp.eq.s32.totalorder %v1236, 1
        %v1245 = vsel %vm1237, %v1051, 0.0
        %v1246 = vsel %vm1238, %v1052, 0.0
        %v1247 = vsel %vm1239, %v1053, 0.0
        %v1248 = vsel %vm1240, %v1054, 0.0
        %v1249 = vsel %vm1241, %v1055, 0.0
        %v1250 = vsel %vm1242, %v1056, 0.0
        %v1251 = vsel %vm1243, %v1057, 0.0
        %v1252 = vsel %vm1244, %v1058, 0.0
        %v1253 = vrot.slane %v1245, 4
        %v1254 = vadd.f32 %v1245, %v1253
        %v1255 = vrot.slane %v1254, 2
        %v1256 = vadd.f32 %v1254, %v1255
        %v1257 = vrot.slane %v1256, 1
        %v1258 = vadd.f32 %v1256, %v1257
        %v1259 = vrot.slane %v1246, 4
        %v1260 = vadd.f32 %v1246, %v1259
        %v1261 = vrot.slane %v1260, 2
        %v1262 = vadd.f32 %v1260, %v1261
        %v1263 = vrot.slane %v1262, 1
        %v1264 = vadd.f32 %v1262, %v1263
        %v1265 = vrot.slane %v1247, 4
        %v1266 = vadd.f32 %v1247, %v1265
        %v1267 = vrot.slane %v1266, 2
        %v1268 = vadd.f32 %v1266, %v1267
        %v1269 = vrot.slane %v1268, 1
        %v1270 = vadd.f32 %v1268, %v1269
        %v1271 = vrot.slane %v1248, 4
        %v1272 = vadd.f32 %v1248, %v1271
        %v1273 = vrot.slane %v1272, 2
        %v1274 = vadd.f32 %v1272, %v1273
        %v1275 = vrot.slane %v1274, 1
        %v1276 = vadd.f32 %v1274, %v1275
        %v1277 = vrot.slane %v1249, 4
        %v1278 = vadd.f32 %v1249, %v1277
        %v1279 = vrot.slane %v1278, 2
        %v1280 = vadd.f32 %v1278, %v1279
        %v1281 = vrot.slane %v1280, 1
        %v1282 = vadd.f32 %v1280, %v1281
        %v1283 = vrot.slane %v1250, 4
        %v1284 = vadd.f32 %v1250, %v1283
        %v1285 = vrot.slane %v1284, 2
        %v1286 = vadd.f32 %v1284, %v1285
        %v1287 = vrot.slane %v1286, 1
        %v1288 = vadd.f32 %v1286, %v1287
        %v1289 = vrot.slane %v1251, 4
        %v1290 = vadd.f32 %v1251, %v1289
        %v1291 = vrot.slane %v1290, 2
        %v1292 = vadd.f32 %v1290, %v1291
        %v1293 = vrot.slane %v1292, 1
        %v1294 = vadd.f32 %v1292, %v1293
        %v1295 = vrot.slane %v1252, 4
        %v1296 = vadd.f32 %v1252, %v1295
        %v1297 = vrot.slane %v1296, 2
        %v1298 = vadd.f32 %v1296, %v1297
        %v1299 = vrot.slane %v1298, 1
        %v1300 = vadd.f32 %v1298, %v1299
        %v1301 = vcvt.s32.f32 %v1229
        %v1302 = vcvt.s32.f32 %v1230
        %v1303 = vcvt.s32.f32 %v1231
        %v1304 = vcvt.s32.f32 %v1232
        %v1305 = vcvt.s32.f32 %v1233
        %v1306 = vcvt.s32.f32 %v1234
        %v1307 = vcvt.s32.f32 %v1235
        %v1308 = vcvt.s32.f32 %v1236
        %v1317 = vlaneseq
        %v1318 = vand.u32 %v1317, 127
        %v1319 = vlaneseq
        %v1320 = vshrl.u32 %v1319, 7
        %v1321 = vsub.s32 %v1318, %v1320
        %v1322 = vrot.slane %v1301, %v1321
        %v1323 = vlaneseq
        %v1324 = vshrl.u32 %v1323, 7
        %v1325 = vsub.s32 %v1318, %v1324
        %v1326 = vrot.slane %v1302, %v1325
        %v1327 = vlaneseq
        %v1328 = vshrl.u32 %v1327, 7
        %v1329 = vsub.s32 %v1318, %v1328
        %v1330 = vrot.slane %v1303, %v1329
        %v1331 = vlaneseq
        %v1332 = vshrl.u32 %v1331, 7
        %v1333 = vsub.s32 %v1318, %v1332
        %v1334 = vrot.slane %v1304, %v1333
        %v1335 = vlaneseq
        %v1336 = vshrl.u32 %v1335, 7
        %v1337 = vsub.s32 %v1318, %v1336
        %v1338 = vrot.slane %v1305, %v1337
        %v1339 = vlaneseq
        %v1340 = vshrl.u32 %v1339, 7
        %v1341 = vsub.s32 %v1318, %v1340
        %v1342 = vrot.slane %v1306, %v1341
        %v1343 = vlaneseq
        %v1344 = vshrl.u32 %v1343, 7
        %v1345 = vsub.s32 %v1318, %v1344
        %v1346 = vrot.slane %v1307, %v1345
        %v1347 = vlaneseq
        %v1348 = vshrl.u32 %v1347, 7
        %v1349 = vsub.s32 %v1318, %v1348
        %v1350 = vrot.slane %v1308, %v1349
        %vm1351 = vcmask 1041409
        %v1352 = vsel %vm1351, %v1326, %v1322
        %vm1353 = vcmask 1042434
        %v1354 = vsel %vm1353, %v1330, %v1352
        %vm1355 = vcmask 1043459
        %v1356 = vsel %vm1355, %v1334, %v1354
        %vm1357 = vcmask 1044484
        %v1358 = vsel %vm1357, %v1338, %v1356
        %vm1359 = vcmask 1045509
        %v1360 = vsel %vm1359, %v1342, %v1358
        %vm1361 = vcmask 1046534
        %v1362 = vsel %vm1361, %v1346, %v1360
        %vm1363 = vcmask 1047559
        %v1364 = vsel %vm1363, %v1350, %v1362
        %vm1366 = vcmask 64512
        %v1367 = vsel %vm1366, %v1364, 0.0
        %1368 = vadd.xlane.f32.xlu0 %v1367
        %v1369 = vpop.xlane.xlu0 %1368
        %v1370 = vpack.c.bf16 %v1258, %v1258
        %v1371 = vpack.c.bf16 %v1264, %v1264
        %v1372 = vpack.c.bf16 %v1270, %v1270
        %v1373 = vpack.c.bf16 %v1276, %v1276
        %v1374 = vpack.c.bf16 %v1282, %v1282
        %v1375 = vpack.c.bf16 %v1288, %v1288
        %v1376 = vpack.c.bf16 %v1294, %v1294
        %v1377 = vpack.c.bf16 %v1300, %v1300
        %s1378 = scalar_lea.vmem [#allocation7], 320
        %v1379 = vld [vmem:[%s1378] sm:$0xf]
        %v1380 = vld [vmem:[%s1378 + $0x4] sm:$0xf]
        %v1381 = vld [vmem:[%s1378 + $0x8] sm:$0xf]
        %v1382 = vld [vmem:[%s1378 + $0xc] sm:$0xf]
        %v1383 = vld [vmem:[%s1378 + $0x10] sm:$0xf]
        %v1384 = vld [vmem:[%s1378 + $0x14] sm:$0xf]
        %v1385 = vld [vmem:[%s1378 + $0x18] sm:$0xf]
        %v1386 = vld [vmem:[%s1378 + $0x1c] sm:$0xf]
        %v1387 = vld [vmem:[%s1378 + $0x20] sm:$0xf]
        %v1388 = vld [vmem:[%s1378 + $0x24] sm:$0xf]
        %v1389 = vld [vmem:[%s1378 + $0x28] sm:$0xf]
        %v1390 = vld [vmem:[%s1378 + $0x2c] sm:$0xf]
        %v1391 = vld [vmem:[%s1378 + $0x30] sm:$0xf]
        %v1392 = vld [vmem:[%s1378 + $0x34] sm:$0xf]
        %v1393 = vld [vmem:[%s1378 + $0x38] sm:$0xf]
        %v1394 = vld [vmem:[%s1378 + $0x3c] sm:$0xf]
        %v1395 = vld [vmem:[#allocation8 + $0x6] sm:$0x1]
        %v1396 = vlaneseq
        %v1397 = vshrl.u32 %v1396, 7
        %v1398 = vsub.s32 0, %v1397
        %v1399 = vrot.slane %v1395, %v1398
        %v1400 = vmul.f32 %v1369, %v1399
        %v1409 = vunpack.c.l.b16 %v1370
        %v1410 = vunpack.c.l.b16 %v1371
        %v1411 = vunpack.c.l.b16 %v1372
        %v1412 = vunpack.c.l.b16 %v1373
        %v1413 = vunpack.c.l.b16 %v1374
        %v1414 = vunpack.c.l.b16 %v1375
        %v1415 = vunpack.c.l.b16 %v1376
        %v1416 = vunpack.c.l.b16 %v1377
        %v1417 = vsel %vm1351, %v1410, %v1409
        %v1418 = vsel %vm1353, %v1411, %v1417
        %v1419 = vsel %vm1355, %v1412, %v1418
        %v1420 = vsel %vm1357, %v1413, %v1419
        %v1421 = vsel %vm1359, %v1414, %v1420
        %v1422 = vsel %vm1361, %v1415, %v1421
        %v1423 = vsel %vm1363, %v1416, %v1422
        %v1424 = vpack.c.b16 %v1423, %v1423
        %v1442 = vunpack.c.l.b16 %v1379
        %v1443 = vunpack.c.l.b16 %v1380
        %v1444 = vunpack.c.l.b16 %v1381
        %v1445 = vunpack.c.l.b16 %v1382
        %v1446 = vunpack.c.l.b16 %v1383
        %v1447 = vunpack.c.l.b16 %v1384
        %v1448 = vunpack.c.l.b16 %v1385
        %v1449 = vunpack.c.l.b16 %v1386
        %v1450 = vunpack.c.l.b16 %v1387
        %v1451 = vunpack.c.l.b16 %v1388
        %v1452 = vunpack.c.l.b16 %v1389
        %v1453 = vunpack.c.l.b16 %v1390
        %v1454 = vunpack.c.l.b16 %v1391
        %v1455 = vunpack.c.l.b16 %v1392
        %v1456 = vunpack.c.l.b16 %v1393
        %v1457 = vunpack.c.l.b16 %v1394
        %v1458 = vpack.c.b16 %v1443, %v1442
        %v1459 = vpack.c.b16 %v1445, %v1444
        %v1460 = vpack.c.b16 %v1447, %v1446
        %v1461 = vpack.c.b16 %v1449, %v1448
        %v1462 = vpack.c.b16 %v1451, %v1450
        %v1463 = vpack.c.b16 %v1453, %v1452
        %v1464 = vpack.c.b16 %v1455, %v1454
        %v1465 = vpack.c.b16 %v1457, %v1456
        %1474 = vmatprep.subr.bf16.mxu0 0
        %1475 = vmatpush1.bf16.msra.mxu0 %v1458
        %1476 = vmatprep.subr.bf16.mxu0 0
        %1477 = vmatpush1.bf16.msra.mxu0 %v1459
        %1478 = vmatprep.subr.bf16.mxu0 0
        %1479 = vmatpush1.bf16.msra.mxu0 %v1460
        %1480 = vmatprep.subr.bf16.mxu0 0
        %1481 = vmatpush1.bf16.msra.mxu0 %v1461
        %1482 = vmatprep.subr.bf16.mxu0 0
        %1483 = vmatpush1.bf16.msra.mxu0 %v1462
        %1484 = vmatprep.subr.bf16.mxu0 0
        %1485 = vmatpush1.bf16.msra.mxu0 %v1463
        %1486 = vmatprep.subr.bf16.mxu0 0
        %1487 = vmatpush1.bf16.msra.mxu0 %v1464
        %1488 = vmatprep.subr.bf16.mxu0 0
        %1489 = vmatpush1.bf16.msra.mxu0 %v1465
        %1490 = vmatprep.subr.bf16.mxu0 0
        %1491 = vmatpush1.bf16.msra.mxu0 0
        %1492 = vmatprep.subr.bf16.mxu0 0
        %1493 = vmatpush1.bf16.msra.mxu0 0
        %1494 = vmatprep.subr.bf16.mxu0 0
        %1495 = vmatpush1.bf16.msra.mxu0 0
        %1496 = vmatprep.subr.bf16.mxu0 0
        %1497 = vmatpush1.bf16.msra.mxu0 0
        %1498 = vmatprep.subr.bf16.mxu0 0
        %1499 = vmatpush1.bf16.msra.mxu0 0
        %1500 = vmatprep.subr.bf16.mxu0 0
        %1501 = vmatpush1.bf16.msra.mxu0 0
        %1502 = vmatprep.subr.bf16.mxu0 0
        %1503 = vmatpush1.bf16.msra.mxu0 0
        %1504 = vmatprep.subr.bf16.mxu0 0
        %1505 = vmatpush1.bf16.msra.mxu0 0
        %1506 = vmatprep.mubr.bf16.mxu0 0
        %1507 = vmatmul.mubr.bf16.gmra.mrb[0].mxu0 %v1424
        %v1508 = vpop.f32.mrb[0].mxu0
        %v1509 = vadd.f32 %v1400, %v1508
        %v1510 = vpop.f32.mrb[0].mxu0
        %v1511 = vpop.f32.mrb[0].mxu0
        %v1512 = vpop.f32.mrb[0].mxu0
        %1513 = vdwg.mxu0
        %v1514 = vpack.c.bf16 %v1509, %v1509
        %s1515 = scalar_lea.vmem [#allocation7], 384
        %v1516 = vld [vmem:[%s1515] sm:$0xf]
        %v1517 = vld [vmem:[%s1515 + $0x4] sm:$0xf]
        %v1518 = vld [vmem:[%s1515 + $0x8] sm:$0xf]
        %v1519 = vld [vmem:[%s1515 + $0xc] sm:$0xf]
        %v1520 = vld [vmem:[%s1515 + $0x10] sm:$0xf]
        %v1521 = vld [vmem:[%s1515 + $0x14] sm:$0xf]
        %v1522 = vld [vmem:[%s1515 + $0x18] sm:$0xf]
        %v1523 = vld [vmem:[%s1515 + $0x1c] sm:$0xf]
        %v1524 = vld [vmem:[%s1515 + $0x20] sm:$0xf]
        %v1525 = vld [vmem:[%s1515 + $0x24] sm:$0xf]
        %v1526 = vld [vmem:[%s1515 + $0x28] sm:$0xf]
        %v1527 = vld [vmem:[%s1515 + $0x2c] sm:$0xf]
        %v1528 = vld [vmem:[%s1515 + $0x30] sm:$0xf]
        %v1529 = vld [vmem:[%s1515 + $0x34] sm:$0xf]
        %v1530 = vld [vmem:[%s1515 + $0x38] sm:$0xf]
        %v1531 = vld [vmem:[%s1515 + $0x3c] sm:$0xf]
        %v1532 = vld [vmem:[#allocation8 + $0x7] sm:$0x1]
        %v1533 = vlaneseq
        %v1534 = vshrl.u32 %v1533, 7
        %v1535 = vsub.s32 0, %v1534
        %v1536 = vrot.slane %v1532, %v1535
        %v1553 = vunpack.c.l.b16 %v1516
        %v1554 = vunpack.c.l.b16 %v1517
        %v1555 = vunpack.c.l.b16 %v1518
        %v1556 = vunpack.c.l.b16 %v1519
        %v1557 = vunpack.c.l.b16 %v1520
        %v1558 = vunpack.c.l.b16 %v1521
        %v1559 = vunpack.c.l.b16 %v1522
        %v1560 = vunpack.c.l.b16 %v1523
        %v1561 = vunpack.c.l.b16 %v1524
        %v1562 = vunpack.c.l.b16 %v1525
        %v1563 = vunpack.c.l.b16 %v1526
        %v1564 = vunpack.c.l.b16 %v1527
        %v1565 = vunpack.c.l.b16 %v1528
        %v1566 = vunpack.c.l.b16 %v1529
        %v1567 = vunpack.c.l.b16 %v1530
        %v1568 = vunpack.c.l.b16 %v1531
        %v1569 = vpack.c.b16 %v1554, %v1553
        %v1570 = vpack.c.b16 %v1556, %v1555
        %v1571 = vpack.c.b16 %v1558, %v1557
        %v1572 = vpack.c.b16 %v1560, %v1559
        %v1573 = vpack.c.b16 %v1562, %v1561
        %v1574 = vpack.c.b16 %v1564, %v1563
        %v1575 = vpack.c.b16 %v1566, %v1565
        %v1576 = vpack.c.b16 %v1568, %v1567
        %1585 = vmatprep.subr.bf16.mxu0 0
        %1586 = vmatpush1.bf16.msra.mxu0 %v1569
        %1587 = vmatprep.subr.bf16.mxu0 0
        %1588 = vmatpush1.bf16.msra.mxu0 %v1570
        %1589 = vmatprep.subr.bf16.mxu0 0
        %1590 = vmatpush1.bf16.msra.mxu0 %v1571
        %1591 = vmatprep.subr.bf16.mxu0 0
        %1592 = vmatpush1.bf16.msra.mxu0 %v1572
        %1593 = vmatprep.subr.bf16.mxu0 0
        %1594 = vmatpush1.bf16.msra.mxu0 %v1573
        %1595 = vmatprep.subr.bf16.mxu0 0
        %1596 = vmatpush1.bf16.msra.mxu0 %v1574
        %1597 = vmatprep.subr.bf16.mxu0 0
        %1598 = vmatpush1.bf16.msra.mxu0 %v1575
        %1599 = vmatprep.subr.bf16.mxu0 0
        %1600 = vmatpush1.bf16.msra.mxu0 %v1576
        %1601 = vmatprep.subr.bf16.mxu0 0
        %1602 = vmatpush1.bf16.msra.mxu0 0
        %1603 = vmatprep.subr.bf16.mxu0 0
        %1604 = vmatpush1.bf16.msra.mxu0 0
        %1605 = vmatprep.subr.bf16.mxu0 0
        %1606 = vmatpush1.bf16.msra.mxu0 0
        %1607 = vmatprep.subr.bf16.mxu0 0
        %1608 = vmatpush1.bf16.msra.mxu0 0
        %1609 = vmatprep.subr.bf16.mxu0 0
        %1610 = vmatpush1.bf16.msra.mxu0 0
        %1611 = vmatprep.subr.bf16.mxu0 0
        %1612 = vmatpush1.bf16.msra.mxu0 0
        %1613 = vmatprep.subr.bf16.mxu0 0
        %1614 = vmatpush1.bf16.msra.mxu0 0
        %1615 = vmatprep.subr.bf16.mxu0 0
        %1616 = vmatpush1.bf16.msra.mxu0 0
        %1617 = vmatprep.mubr.bf16.mxu0 0
        %1618 = vmatmul.mubr.bf16.gmra.mrb[0].mxu0 %v1514
        %v1619 = vpop.f32.mrb[0].mxu0
        %v1620 = vadd.f32 %v1536, %v1619
        %v1621 = vpop.f32.mrb[0].mxu0
        %v1622 = vpop.f32.mrb[0].mxu0
        %v1623 = vpop.f32.mrb[0].mxu0
        %1624 = vdwg.mxu0
        %v1625 = vmax.f32 %v1620, 0.0
        %v1626 = vpack.c.bf16 %v1625, %v1625
        %s1627 = scalar_lea.vmem [#allocation7], 448
        %v1628 = vld [vmem:[%s1627] sm:$0xf]
        %v1629 = vld [vmem:[%s1627 + $0x4] sm:$0xf]
        %v1630 = vld [vmem:[%s1627 + $0x8] sm:$0xf]
        %v1631 = vld [vmem:[%s1627 + $0xc] sm:$0xf]
        %v1632 = vld [vmem:[%s1627 + $0x10] sm:$0xf]
        %v1633 = vld [vmem:[%s1627 + $0x14] sm:$0xf]
        %v1634 = vld [vmem:[%s1627 + $0x18] sm:$0xf]
        %v1635 = vld [vmem:[%s1627 + $0x1c] sm:$0xf]
        %v1636 = vld [vmem:[%s1627 + $0x20] sm:$0xf]
        %v1637 = vld [vmem:[%s1627 + $0x24] sm:$0xf]
        %v1638 = vld [vmem:[%s1627 + $0x28] sm:$0xf]
        %v1639 = vld [vmem:[%s1627 + $0x2c] sm:$0xf]
        %v1640 = vld [vmem:[%s1627 + $0x30] sm:$0xf]
        %v1641 = vld [vmem:[%s1627 + $0x34] sm:$0xf]
        %v1642 = vld [vmem:[%s1627 + $0x38] sm:$0xf]
        %v1643 = vld [vmem:[%s1627 + $0x3c] sm:$0xf]
        %v1644 = vld [vmem:[#allocation8 + $0x8] sm:$0x1]
        %v1645 = vlaneseq
        %v1646 = vshrl.u32 %v1645, 7
        %v1647 = vsub.s32 0, %v1646
        %v1648 = vrot.slane %v1644, %v1647
        %v1665 = vunpack.c.l.b16 %v1628
        %v1666 = vunpack.c.l.b16 %v1629
        %v1667 = vunpack.c.l.b16 %v1630
        %v1668 = vunpack.c.l.b16 %v1631
        %v1669 = vunpack.c.l.b16 %v1632
        %v1670 = vunpack.c.l.b16 %v1633
        %v1671 = vunpack.c.l.b16 %v1634
        %v1672 = vunpack.c.l.b16 %v1635
        %v1673 = vunpack.c.l.b16 %v1636
        %v1674 = vunpack.c.l.b16 %v1637
        %v1675 = vunpack.c.l.b16 %v1638
        %v1676 = vunpack.c.l.b16 %v1639
        %v1677 = vunpack.c.l.b16 %v1640
        %v1678 = vunpack.c.l.b16 %v1641
        %v1679 = vunpack.c.l.b16 %v1642
        %v1680 = vunpack.c.l.b16 %v1643
        %v1681 = vpack.c.b16 %v1666, %v1665
        %v1682 = vpack.c.b16 %v1668, %v1667
        %v1683 = vpack.c.b16 %v1670, %v1669
        %v1684 = vpack.c.b16 %v1672, %v1671
        %v1685 = vpack.c.b16 %v1674, %v1673
        %v1686 = vpack.c.b16 %v1676, %v1675
        %v1687 = vpack.c.b16 %v1678, %v1677
        %v1688 = vpack.c.b16 %v1680, %v1679
        %1697 = vmatprep.subr.bf16.mxu0 0
        %1698 = vmatpush1.bf16.msra.mxu0 %v1681
        %1699 = vmatprep.subr.bf16.mxu0 0
        %1700 = vmatpush1.bf16.msra.mxu0 %v1682
        %1701 = vmatprep.subr.bf16.mxu0 0
        %1702 = vmatpush1.bf16.msra.mxu0 %v1683
        %1703 = vmatprep.subr.bf16.mxu0 0
        %1704 = vmatpush1.bf16.msra.mxu0 %v1684
        %1705 = vmatprep.subr.bf16.mxu0 0
        %1706 = vmatpush1.bf16.msra.mxu0 %v1685
        %1707 = vmatprep.subr.bf16.mxu0 0
        %1708 = vmatpush1.bf16.msra.mxu0 %v1686
        %1709 = vmatprep.subr.bf16.mxu0 0
        %1710 = vmatpush1.bf16.msra.mxu0 %v1687
        %1711 = vmatprep.subr.bf16.mxu0 0
        %1712 = vmatpush1.bf16.msra.mxu0 %v1688
        %1713 = vmatprep.subr.bf16.mxu0 0
        %1714 = vmatpush1.bf16.msra.mxu0 0
        %1715 = vmatprep.subr.bf16.mxu0 0
        %1716 = vmatpush1.bf16.msra.mxu0 0
        %1717 = vmatprep.subr.bf16.mxu0 0
        %1718 = vmatpush1.bf16.msra.mxu0 0
        %1719 = vmatprep.subr.bf16.mxu0 0
        %1720 = vmatpush1.bf16.msra.mxu0 0
        %1721 = vmatprep.subr.bf16.mxu0 0
        %1722 = vmatpush1.bf16.msra.mxu0 0
        %1723 = vmatprep.subr.bf16.mxu0 0
        %1724 = vmatpush1.bf16.msra.mxu0 0
        %1725 = vmatprep.subr.bf16.mxu0 0
        %1726 = vmatpush1.bf16.msra.mxu0 0
        %1727 = vmatprep.subr.bf16.mxu0 0
        %1728 = vmatpush1.bf16.msra.mxu0 0
        %1729 = vmatprep.mubr.bf16.mxu0 0
        %1730 = vmatmul.mubr.bf16.gmra.mrb[0].mxu0 %v1626
        %v1731 = vpop.f32.mrb[0].mxu0
        %v1732 = vadd.f32 %v1648, %v1731
        %v1733 = vpop.f32.mrb[0].mxu0
        %v1734 = vpop.f32.mrb[0].mxu0
        %v1735 = vpop.f32.mrb[0].mxu0
        %1736 = vdwg.mxu0
        %v1737 = vmax.f32 %v1732, 0.0
        %v1738 = vpack.c.bf16 %v1737, %v1737
        %s1739 = scalar_lea.vmem [#allocation7], 512
        %v1740 = vld [vmem:[%s1739] sm:$0xf]
        %v1741 = vld [vmem:[%s1739 + $0x4] sm:$0xf]
        %v1742 = vld [vmem:[%s1739 + $0x8] sm:$0xf]
        %v1743 = vld [vmem:[%s1739 + $0xc] sm:$0xf]
        %v1744 = vld [vmem:[%s1739 + $0x10] sm:$0xf]
        %v1745 = vld [vmem:[%s1739 + $0x14] sm:$0xf]
        %v1746 = vld [vmem:[%s1739 + $0x18] sm:$0xf]
        %v1747 = vld [vmem:[%s1739 + $0x1c] sm:$0xf]
        %v1748 = vld [vmem:[%s1739 + $0x20] sm:$0xf]
        %v1749 = vld [vmem:[%s1739 + $0x24] sm:$0xf]
        %v1750 = vld [vmem:[%s1739 + $0x28] sm:$0xf]
        %v1751 = vld [vmem:[%s1739 + $0x2c] sm:$0xf]
        %v1752 = vld [vmem:[%s1739 + $0x30] sm:$0xf]
        %v1753 = vld [vmem:[%s1739 + $0x34] sm:$0xf]
        %v1754 = vld [vmem:[%s1739 + $0x38] sm:$0xf]
        %v1755 = vld [vmem:[%s1739 + $0x3c] sm:$0xf]
        %v1756 = vld [vmem:[#allocation8 + $0x9] sm:$0x1]
        %v1757 = vlaneseq
        %v1758 = vshrl.u32 %v1757, 7
        %v1759 = vsub.s32 0, %v1758
        %v1760 = vrot.slane %v1756, %v1759
        %v1777 = vunpack.c.l.b16 %v1740
        %v1778 = vunpack.c.l.b16 %v1741
        %v1779 = vunpack.c.l.b16 %v1742
        %v1780 = vunpack.c.l.b16 %v1743
        %v1781 = vunpack.c.l.b16 %v1744
        %v1782 = vunpack.c.l.b16 %v1745
        %v1783 = vunpack.c.l.b16 %v1746
        %v1784 = vunpack.c.l.b16 %v1747
        %v1785 = vunpack.c.l.b16 %v1748
        %v1786 = vunpack.c.l.b16 %v1749
        %v1787 = vunpack.c.l.b16 %v1750
        %v1788 = vunpack.c.l.b16 %v1751
        %v1789 = vunpack.c.l.b16 %v1752
        %v1790 = vunpack.c.l.b16 %v1753
        %v1791 = vunpack.c.l.b16 %v1754
        %v1792 = vunpack.c.l.b16 %v1755
        %v1793 = vpack.c.b16 %v1778, %v1777
        %v1794 = vpack.c.b16 %v1780, %v1779
        %v1795 = vpack.c.b16 %v1782, %v1781
        %v1796 = vpack.c.b16 %v1784, %v1783
        %v1797 = vpack.c.b16 %v1786, %v1785
        %v1798 = vpack.c.b16 %v1788, %v1787
        %v1799 = vpack.c.b16 %v1790, %v1789
        %v1800 = vpack.c.b16 %v1792, %v1791
        %1809 = vmatprep.subr.bf16.mxu0 0
        %1810 = vmatpush1.bf16.msra.mxu0 %v1793
        %1811 = vmatprep.subr.bf16.mxu0 0
        %1812 = vmatpush1.bf16.msra.mxu0 %v1794
        %1813 = vmatprep.subr.bf16.mxu0 0
        %1814 = vmatpush1.bf16.msra.mxu0 %v1795
        %1815 = vmatprep.subr.bf16.mxu0 0
        %1816 = vmatpush1.bf16.msra.mxu0 %v1796
        %1817 = vmatprep.subr.bf16.mxu0 0
        %1818 = vmatpush1.bf16.msra.mxu0 %v1797
        %1819 = vmatprep.subr.bf16.mxu0 0
        %1820 = vmatpush1.bf16.msra.mxu0 %v1798
        %1821 = vmatprep.subr.bf16.mxu0 0
        %1822 = vmatpush1.bf16.msra.mxu0 %v1799
        %1823 = vmatprep.subr.bf16.mxu0 0
        %1824 = vmatpush1.bf16.msra.mxu0 %v1800
        %1825 = vmatprep.subr.bf16.mxu0 0
        %1826 = vmatpush1.bf16.msra.mxu0 0
        %1827 = vmatprep.subr.bf16.mxu0 0
        %1828 = vmatpush1.bf16.msra.mxu0 0
        %1829 = vmatprep.subr.bf16.mxu0 0
        %1830 = vmatpush1.bf16.msra.mxu0 0
        %1831 = vmatprep.subr.bf16.mxu0 0
        %1832 = vmatpush1.bf16.msra.mxu0 0
        %1833 = vmatprep.subr.bf16.mxu0 0
        %1834 = vmatpush1.bf16.msra.mxu0 0
        %1835 = vmatprep.subr.bf16.mxu0 0
        %1836 = vmatpush1.bf16.msra.mxu0 0
        %1837 = vmatprep.subr.bf16.mxu0 0
        %1838 = vmatpush1.bf16.msra.mxu0 0
        %1839 = vmatprep.subr.bf16.mxu0 0
        %1840 = vmatpush1.bf16.msra.mxu0 0
        %1841 = vmatprep.mubr.bf16.mxu0 0
        %1842 = vmatmul.mubr.bf16.gmra.mrb[0].mxu0 %v1738
        %v1843 = vpop.f32.mrb[0].mxu0
        %v1844 = vadd.f32 %v1760, %v1843
        %v1845 = vpop.f32.mrb[0].mxu0
        %v1846 = vpop.f32.mrb[0].mxu0
        %v1847 = vpop.f32.mrb[0].mxu0
        %1848 = vdwg.mxu0
        %v1849 = vmax.f32 %v1844, 0.0
        %v1850 = vpack.c.bf16 %v1849, %v1849
        %s1851 = scalar_lea.vmem [#allocation7], 576
        %v1852 = vld [vmem:[%s1851] sm:$0xf]
        %v1853 = vld [vmem:[%s1851 + $0x4] sm:$0xf]
        %v1854 = vld [vmem:[%s1851 + $0x8] sm:$0xf]
        %v1855 = vld [vmem:[%s1851 + $0xc] sm:$0xf]
        %v1856 = vld [vmem:[%s1851 + $0x10] sm:$0xf]
        %v1857 = vld [vmem:[%s1851 + $0x14] sm:$0xf]
        %v1858 = vld [vmem:[%s1851 + $0x18] sm:$0xf]
        %v1859 = vld [vmem:[%s1851 + $0x1c] sm:$0xf]
        %v1860 = vld [vmem:[%s1851 + $0x20] sm:$0xf]
        %v1861 = vld [vmem:[%s1851 + $0x24] sm:$0xf]
        %v1862 = vld [vmem:[%s1851 + $0x28] sm:$0xf]
        %v1863 = vld [vmem:[%s1851 + $0x2c] sm:$0xf]
        %v1864 = vld [vmem:[%s1851 + $0x30] sm:$0xf]
        %v1865 = vld [vmem:[%s1851 + $0x34] sm:$0xf]
        %v1866 = vld [vmem:[%s1851 + $0x38] sm:$0xf]
        %v1867 = vld [vmem:[%s1851 + $0x3c] sm:$0xf]
        %v1868 = vld [vmem:[#allocation8 + $0xa] sm:$0x1]
        %v1869 = vlaneseq
        %v1870 = vshrl.u32 %v1869, 7
        %v1871 = vsub.s32 0, %v1870
        %v1872 = vrot.slane %v1868, %v1871
        %v1889 = vunpack.c.l.b16 %v1852
        %v1890 = vunpack.c.l.b16 %v1853
        %v1891 = vunpack.c.l.b16 %v1854
        %v1892 = vunpack.c.l.b16 %v1855
        %v1893 = vunpack.c.l.b16 %v1856
        %v1894 = vunpack.c.l.b16 %v1857
        %v1895 = vunpack.c.l.b16 %v1858
        %v1896 = vunpack.c.l.b16 %v1859
        %v1897 = vunpack.c.l.b16 %v1860
        %v1898 = vunpack.c.l.b16 %v1861
        %v1899 = vunpack.c.l.b16 %v1862
        %v1900 = vunpack.c.l.b16 %v1863
        %v1901 = vunpack.c.l.b16 %v1864
        %v1902 = vunpack.c.l.b16 %v1865
        %v1903 = vunpack.c.l.b16 %v1866
        %v1904 = vunpack.c.l.b16 %v1867
        %v1905 = vpack.c.b16 %v1890, %v1889
        %v1906 = vpack.c.b16 %v1892, %v1891
        %v1907 = vpack.c.b16 %v1894, %v1893
        %v1908 = vpack.c.b16 %v1896, %v1895
        %v1909 = vpack.c.b16 %v1898, %v1897
        %v1910 = vpack.c.b16 %v1900, %v1899
        %v1911 = vpack.c.b16 %v1902, %v1901
        %v1912 = vpack.c.b16 %v1904, %v1903
        %1921 = vmatprep.subr.bf16.mxu0 0
        %1922 = vmatpush1.bf16.msra.mxu0 %v1905
        %1923 = vmatprep.subr.bf16.mxu0 0
        %1924 = vmatpush1.bf16.msra.mxu0 %v1906
        %1925 = vmatprep.subr.bf16.mxu0 0
        %1926 = vmatpush1.bf16.msra.mxu0 %v1907
        %1927 = vmatprep.subr.bf16.mxu0 0
        %1928 = vmatpush1.bf16.msra.mxu0 %v1908
        %1929 = vmatprep.subr.bf16.mxu0 0
        %1930 = vmatpush1.bf16.msra.mxu0 %v1909
        %1931 = vmatprep.subr.bf16.mxu0 0
        %1932 = vmatpush1.bf16.msra.mxu0 %v1910
        %1933 = vmatprep.subr.bf16.mxu0 0
        %1934 = vmatpush1.bf16.msra.mxu0 %v1911
        %1935 = vmatprep.subr.bf16.mxu0 0
        %1936 = vmatpush1.bf16.msra.mxu0 %v1912
        %1937 = vmatprep.subr.bf16.mxu0 0
        %1938 = vmatpush1.bf16.msra.mxu0 0
        %1939 = vmatprep.subr.bf16.mxu0 0
        %1940 = vmatpush1.bf16.msra.mxu0 0
        %1941 = vmatprep.subr.bf16.mxu0 0
        %1942 = vmatpush1.bf16.msra.mxu0 0
        %1943 = vmatprep.subr.bf16.mxu0 0
        %1944 = vmatpush1.bf16.msra.mxu0 0
        %1945 = vmatprep.subr.bf16.mxu0 0
        %1946 = vmatpush1.bf16.msra.mxu0 0
        %1947 = vmatprep.subr.bf16.mxu0 0
        %1948 = vmatpush1.bf16.msra.mxu0 0
        %1949 = vmatprep.subr.bf16.mxu0 0
        %1950 = vmatpush1.bf16.msra.mxu0 0
        %1951 = vmatprep.subr.bf16.mxu0 0
        %1952 = vmatpush1.bf16.msra.mxu0 0
        %1953 = vmatprep.mubr.bf16.mxu0 0
        %1954 = vmatmul.mubr.bf16.gmra.mrb[0].mxu0 %v1850
        %v1955 = vpop.f32.mrb[0].mxu0
        %v1956 = vadd.f32 %v1872, %v1955
        %v1957 = vpop.f32.mrb[0].mxu0
        %v1958 = vpop.f32.mrb[0].mxu0
        %v1959 = vpop.f32.mrb[0].mxu0
        %1960 = vdwg.mxu0
        %1961 = vst [vmem:[%s281] sm:$0xff] %v1956
        %s1962 = sand.u32 %s142, 1
        %s1963 = scalar_lea.sflag [#allocation4], %s1962
        %s1964 = sand.u32 %s142, 1
        %s1965 = smul.addr %s1964, 8
        %s1966 = scalar_lea.vmem [#allocation10], %s1965
        // Predicated region
        $region57: #{tpu_custom_call.1} parent=39 // pred_check
          %p1967 = pneg %p152
        $region58: #{tpu_custom_call.1} parent=39 // pred_check_branch
          %1969 = sbr.rel (%p1967) target = $region60
        $region59: #{tpu_custom_call.1} parent=39 // pred_region
          %s1971 = ssub.s32 128, 128
          %1972 = vsyncadd %s1963, %s1971
          %s1973 = smul.addr %s24, 128
          %s1974 = scalar_lea.hbm %s5, %s1973
          %s1976 = sshll.u32 %s1966, 4
          %s1977 = int_to_ptr.vmem [resolvable:$true] %s1976
          %1979 = dma.vmem_to_hbm [thread:$0]  %s1977, 128, %s1974, %s1963
        $region60: #{tpu_custom_call.1} parent=39 // pred_fallthru
          _
      $region40: #{tpu_custom_call.1} parent=5 // pred_fallthru
        _
      %p1980 = scmp.le.s32.totalorder 2, %s19
      // Predicated region
      $region61: #{tpu_custom_call.1} parent=5 // pred_check
        %p1981 = pneg %p1980
      $region62: #{tpu_custom_call.1} parent=5 // pred_check_branch
        %1983 = sbr.rel (%p1981) target = $region64
      $region63: #{tpu_custom_call.1} parent=5 // pred_region
        %s1984 = ssub.s32 %s19, 2
        // Predicated region
        $region65: #{tpu_custom_call.1} parent=63 // pred_check
          %p1985 = pneg %p158
        $region66: #{tpu_custom_call.1} parent=63 // pred_check_branch
          %1987 = sbr.rel (%p1985) target = $region68
        $region67: #{tpu_custom_call.1} parent=63 // pred_region
          %s1988 = sand.u32 %s143, 1
          %s1989 = scalar_lea.sflag [#allocation4], %s1988
          %s1990 = sand.u32 %s143, 1
          %s1991 = smul.addr %s1990, 8
          %s1992 = scalar_lea.vmem [#allocation10], %s1991
          %1993 = dma.done %s1989, 128
        $region68: #{tpu_custom_call.1} parent=63 // pred_fallthru
          _
      $region64: #{tpu_custom_call.1} parent=5 // pred_fallthru
        _
    $region6: #{tpu_custom_call.1} parent=1 // loop_footer
      %s23 = sadd.s32 1, %s19
    $region7: #{tpu_custom_call.1} parent=1 // loop_footer_branch
      %18 = sbr.rel target = $region3
    $region8: #{tpu_custom_call.1} parent=1 // loop_exit
      _
    %1994 = vsyncpa [#allocation3], 1
    %s1995 = scalar_lea.sflag [#allocation3], 1
    %1996 = vsyncpa %s1995, 1
    %1997 = vsyncpa [#allocation6], 1
    %1998 = vsyncpa [#allocation9], 1
    %1999 = vsyncpa [#allocation4], 1
    %s2000 = scalar_lea.sflag [#allocation4], 1
    %2001 = vsyncpa %s2000, 1

</llo_original>
